<compile_context>
chip_gen: v7x
topology: tpu7x:2x2x1
jax: 0.10.0
libtpu: 0.0.40
codegen_flags: <defaults>
</compile_context>

<pallas_src>
import functools

import jax
import jax.numpy as jnp
from jax.experimental import pallas as pl
from jax.experimental.pallas import tpu as pltpu

EMB_DIM = 20
MEM = 3                      # FFM memory_size
CTX = 3                      # FFM context_size
LEAKY_SLOPE = 0.01
LN_EPS = 1e-5

# rows of the packed per-position bias / LayerNorm-affine vector slab
ROW_MIXB, ROW_N1G, ROW_N1B, ROW_LINB, ROW_N2G, ROW_N2B = range(6)
NVEC = 8                     # padded to one full sublane group


def _round_up(x, m):
    return ((x + m - 1) // m) * m


def _layernorm(x, gamma, beta):
    mu = jnp.mean(x, axis=-1, keepdims=True)
    var = jnp.mean((x - mu) ** 2, axis=-1, keepdims=True)
    return (x - mu) * jax.lax.rsqrt(var + LN_EPS) * gamma + beta


def _num_tensorcores():
    """2 parallel batch tiles on 2-TensorCore chips (v4/v5p/v7x), 1 otherwise."""
    try:
        kind = jax.devices()[0].device_kind.lower()
    except Exception:
        return 1
    if any(tag in kind for tag in ("v7", "v4", "v5p")):
        return 2
    return 1


# -----------------------------------------------------------------------------
# Kernel: one batch tile; everything in [batch(sublane), T*feature(lane)] layout
# -----------------------------------------------------------------------------
def model_kernel(oh_ref, tok_ref, lin_ref, ae_ref, av_ref, vec_ref, out_ref,
                 *, seg1, seg2):
    ae = ae_ref[...]                                  # [seg1, seg1] per-pos mean (E groups)
    av = av_ref[...]                                  # [seg2, seg2] per-pos mean (V groups)

    # Token gather + causal FFA aggregation (mix_w folded) + per-position
    # gate / gated-skip gathers: ONE matmul against the fused [T*V, 3*seg1] slab.
    g3 = jnp.dot(oh_ref[...], tok_ref[...], preferred_element_type=jnp.float32)
    mixed = g3[:, 0:seg1] + vec_ref[ROW_MIXB:ROW_MIXB + 1, 0:seg1]
    g_out = g3[:, seg1:2 * seg1]
    sg = g3[:, 2 * seg1:3 * seg1]

    # FFM internal LayerNorm (no affine), segmented per position (MXU, not XLU).
    mu = jnp.dot(mixed, ae, preferred_element_type=jnp.float32)
    c = mixed - mu
    var = jnp.dot(c * c, ae, preferred_element_type=jnp.float32)
    x = c * jax.lax.rsqrt(var + LN_EPS)
    x = x * g_out + sg                                # FFM output  [tile_b, seg1]

    # norm1: affine LayerNorm over EMB_DIM per position.
    mu1 = jnp.dot(x, ae, preferred_element_type=jnp.float32)
    c1 = x - mu1
    v1 = jnp.dot(c1 * c1, ae, preferred_element_type=jnp.float32)
    x = (c1 * jax.lax.rsqrt(v1 + LN_EPS) * vec_ref[ROW_N1G:ROW_N1G + 1, 0:seg1]
         + vec_ref[ROW_N1B:ROW_N1B + 1, 0:seg1])

    # linear 20 -> V per position (block-diagonal weight slab) + bias.
    xv = jnp.dot(x, lin_ref[...], preferred_element_type=jnp.float32)
    xv = xv + vec_ref[ROW_LINB:ROW_LINB + 1, 0:seg2]

    # norm2: affine LayerNorm over the vocab per position, then LeakyReLU(0.01).
    mu2 = jnp.dot(xv, av, preferred_element_type=jnp.float32)
    c2 = xv - mu2
    v2 = jnp.dot(c2 * c2, av, preferred_element_type=jnp.float32)
    xn = (c2 * jax.lax.rsqrt(v2 + LN_EPS) * vec_ref[ROW_N2G:ROW_N2G + 1, 0:seg2]
          + vec_ref[ROW_N2B:ROW_N2B + 1, 0:seg2])
    out_ref[...] = jnp.where(xn >= 0, xn, LEAKY_SLOPE * xn)


# -----------------------------------------------------------------------------
# Wrapper-side precompute (once per training step, outside the forward jit)
# -----------------------------------------------------------------------------
def build_w2(a_abs, w_freq, mix_w, T):
    """Causal FFA decay kernel with mix_w folded in: [T*MEM, T*EMB_DIM]."""
    t = jnp.arange(T, dtype=jnp.float32)
    dt = t[None, :] - t[:, None]                      # dt[k, t] = t - k
    causal = (dt >= 0).astype(jnp.float32)
    dt_pos = jnp.maximum(dt, 0.0)                     # clamp before exp (no inf*0 NaN)
    decay = jnp.exp(-jnp.abs(a_abs)[:, None, None] * dt_pos[None]) * causal[None]   # [M,k,t]
    phase = w_freq[:, None, None] * dt_pos[None]                                    # [C,k,t]
    cosp, sinp = jnp.cos(phase), jnp.sin(phase)
    mw = mix_w.reshape(MEM, 2, CTX, EMB_DIM)          # per m: [re c's, im c's]
    term = (jnp.einsum("ckt,mce->mkte", cosp, mw[:, 0])
            + jnp.einsum("ckt,mce->mkte", sinp, mw[:, 1]))
    w2 = decay[:, :, :, None] * term                  # [m, k, t, e]
    return w2.transpose(1, 0, 2, 3).reshape(T * MEM, T * EMB_DIM)


def init_params(key, vocab_size):
    ks = jax.random.split(key, 8)

    def lin(k, fan_in, fan_out):
        bound = 1.0 / (fan_in ** 0.5)
        kw, kb = jax.random.split(k)
        w = jax.random.uniform(kw, (fan_in, fan_out), jnp.float32, -bound, bound)
        b = jax.random.uniform(kb, (1, fan_out), jnp.float32, -bound, bound)
        return w, b

    p = {}
    p["emb"] = jax.random.normal(ks[0], (vocab_size, EMB_DIM), jnp.float32)
    p["n0g"], p["n0b"] = jnp.ones((1, EMB_DIM), jnp.float32), jnp.zeros((1, EMB_DIM), jnp.float32)
    p["pre_w"], p["pre_b"] = lin(ks[1], EMB_DIM, MEM)
    p["gi_w"], p["gi_b"] = lin(ks[2], EMB_DIM, MEM)
    p["go_w"], p["go_b"] = lin(ks[3], EMB_DIM, EMB_DIM)
    p["sk_w"], p["sk_b"] = lin(ks[4], EMB_DIM, EMB_DIM)
    p["mix_w"], p["mix_b"] = lin(ks[5], 2 * MEM * CTX, EMB_DIM)
    p["ffa_a"] = jnp.linspace(0.1, 1.0, MEM).astype(jnp.float32)
    p["ffa_w"] = (2.0 * jnp.pi / jnp.linspace(2.0, 16.0, CTX)).astype(jnp.float32)
    p["n1g"], p["n1b"] = jnp.ones((1, EMB_DIM), jnp.float32), jnp.zeros((1, EMB_DIM), jnp.float32)
    p["lin_w"], p["lin_b"] = lin(ks[6], EMB_DIM, vocab_size)
    p["n2g"], p["n2b"] = (jnp.ones((1, vocab_size), jnp.float32),
                          jnp.zeros((1, vocab_size), jnp.float32))
    return p


def prepare_params(params, T):
    """Fold all parameters into a few lane-aligned slabs.  Once per step."""
    V = params["emb"].shape[0]
    E = EMB_DIM
    TE, TV = T * E, T * V
    seg1, seg2 = _round_up(TE, 128), _round_up(TV, 128)
    kdim = _round_up(TV, 128)

    if kdim * 3 * seg1 * 4 > 64 * 1024 * 1024:
        raise ValueError("fused FFA/gather slab too large for VMEM; "
                         "use a chunked FFA recurrence path for this T/V")

    # per-token tables: emb -> LN0 -> gate projections (hoisted out of kernel)
    h0 = _layernorm(params["emb"], params["n0g"], params["n0b"])          # [V, E]
    pre = h0 @ params["pre_w"] + params["pre_b"]                          # [V, M]
    g_in = jax.nn.sigmoid(h0 @ params["gi_w"] + params["gi_b"])           # [V, M]
    g_out = jax.nn.sigmoid(h0 @ params["go_w"] + params["go_b"])          # [V, E]
    skip = h0 @ params["sk_w"] + params["sk_b"]                           # [V, E]
    y_tab = pre * g_in                                                    # [V, M]
    sg_tab = skip * (1.0 - g_out)                                         # [V, E]

    # causal FFA kernel with mix_w folded, then y_tab folded in as well:
    #   AGG[(k,v),(t,e)] = sum_m y_tab[v,m] * W2[(k,m),(t,e)]
    w2 = build_w2(params["ffa_a"], params["ffa_w"], params["mix_w"], T)   # [T*M, T*E]
    agg = jnp.einsum("vm,kmz->kvz", y_tab, w2.reshape(T, MEM, TE)).reshape(TV, TE)

    # block-diagonal per-position gathers of g_out and skip*(1-g_out)
    eye_t = jnp.eye(T, dtype=jnp.float32)
    gout_bd = jnp.einsum("kt,ve->kvte", eye_t, g_out).reshape(TV, TE)
    sg_bd = jnp.einsum("kt,ve->kvte", eye_t, sg_tab).reshape(TV, TE)

    def pad2(a, r, c):
        return jnp.pad(a, ((0, r - a.shape[0]), (0, c - a.shape[1])))

    tok = jnp.concatenate([pad2(agg, kdim, seg1),
                           pad2(gout_bd, kdim, seg1),
                           pad2(sg_bd, kdim, seg1)], axis=1)              # [kdim, 3*seg1]

    # block-diagonal 20 -> V projection
    lin_bd = jnp.einsum("tu,ev->teuv", eye_t, params["lin_w"]).reshape(TE, TV)
    lin = pad2(lin_bd, seg1, seg2)                                        # [seg1, seg2]

    # block-diagonal segmented-mean (averaging) matrices
    a_e = pad2(jnp.kron(eye_t, jnp.full((E, E), 1.0 / E, jnp.float32)), seg1, seg1)
    a_v = pad2(jnp.kron(eye_t, jnp.full((V, V), 1.0 / V, jnp.float32)), seg2, seg2)

    # per-position bias / LayerNorm-affine vectors, tiled over positions
    width = max(seg1, seg2)

    def row(v, n):
        v = jnp.tile(v.reshape(-1), T)
        return jnp.pad(v, (0, width - n))

    vecs = jnp.zeros((NVEC, width), jnp.float32)
    vecs = vecs.at[ROW_MIXB].set(row(params["mix_b"], TE))
    vecs = vecs.at[ROW_N1G].set(row(params["n1g"], TE))
    vecs = vecs.at[ROW_N1B].set(row(params["n1b"], TE))
    vecs = vecs.at[ROW_LINB].set(row(params["lin_b"], TV))
    vecs = vecs.at[ROW_N2G].set(row(params["n2g"], TV))
    vecs = vecs.at[ROW_N2B].set(row(params["n2b"], TV))

    return {
        "vocab": V,
        "tok": tok.astype(jnp.float32),     # [kdim, 3*seg1]  AGG | g_out | skip*(1-g_out)
        "lin": lin.astype(jnp.float32),     # [seg1, seg2]    block-diag 20->V
        "a_e": a_e.astype(jnp.float32),     # [seg1, seg1]    per-pos mean over E
        "a_v": a_v.astype(jnp.float32),     # [seg2, seg2]    per-pos mean over V
        "vecs": vecs.astype(jnp.float32),   # [NVEC, width]   biases + LN affines
    }


# -----------------------------------------------------------------------------
# Forward wrapper
# -----------------------------------------------------------------------------
@functools.partial(jax.jit, static_argnames=("vocab", "num_tiles"))
def _forward(ids, tok, lin, a_e, a_v, vecs, *, vocab, num_tiles):
    B, T = ids.shape
    TE, TV = T * EMB_DIM, T * vocab
    seg1, seg2 = _round_up(TE, 128), _round_up(TV, 128)
    kdim = tok.shape[0]

    num_tiles = max(1, min(int(num_tiles), B))
    tile_b = _round_up(-(-B // num_tiles), 8)          # 8-sublane-aligned batch tile
    b_pad = tile_b * num_tiles

    # one-hot tokens: OH[b, k*V + v] = 1{ids[b,k] == v}  (built by XLA, tiny)
    oh = jax.nn.one_hot(ids, vocab, dtype=jnp.float32).reshape(B, TV)
    oh = jnp.pad(oh, ((0, b_pad - B), (0, kdim - TV)))

    flops = 2 * b_pad * (kdim * 3 * seg1 + 4 * seg1 * seg1 + seg1 * seg2 + 2 * seg2 * seg2)
    bytes_accessed = 4 * (b_pad * (kdim + seg2) + tok.size + lin.size
                          + a_e.size + a_v.size + vecs.size)

    kernel = functools.partial(model_kernel, seg1=seg1, seg2=seg2)
    grid_spec = pltpu.PrefetchScalarGridSpec(
        num_scalar_prefetch=0,
        grid=(num_tiles,),
        in_specs=[
            pl.BlockSpec((tile_b, kdim), lambda b: (b, 0)),           # one-hot tokens
            pl.BlockSpec((kdim, 3 * seg1), lambda b: (0, 0)),         # fused gather/FFA slab
            pl.BlockSpec((seg1, seg2), lambda b: (0, 0)),             # block-diag 20->V
            pl.BlockSpec((seg1, seg1), lambda b: (0, 0)),             # per-pos mean (E)
            pl.BlockSpec((seg2, seg2), lambda b: (0, 0)),             # per-pos mean (V)
            pl.BlockSpec((NVEC, max(seg1, seg2)), lambda b: (0, 0)),  # bias / LN slab
        ],
        out_specs=pl.BlockSpec((tile_b, seg2), lambda b: (b, 0)),
    )
    out2d = pl.pallas_call(
        kernel,
        out_shape=jax.ShapeDtypeStruct((b_pad, seg2), jnp.float32),
        grid_spec=grid_spec,
        compiler_params=pltpu.CompilerParams(dimension_semantics=("parallel",)),
        cost_estimate=pl.CostEstimate(flops=flops, transcendentals=0,
                                      bytes_accessed=bytes_accessed),
    )(oh, tok, lin, a_e, a_v, vecs)
    # output kept f32 for parity with the torch reference; cast wrapper-side if
    # HBM writeback ever matters at large B.
    return out2d[:B, :TV].reshape(B, T, vocab)


def model_forward(ids, packed, num_tiles=None):
    if num_tiles is None:
        num_tiles = _num_tensorcores()
    return _forward(ids, packed["tok"], packed["lin"], packed["a_e"],
                    packed["a_v"], packed["vecs"],
                    vocab=int(packed["vocab"]), num_tiles=int(num_tiles))


if __name__ == "__main__":
    vocab_size = 32
    B, T = 8, 8

    key = jax.random.PRNGKey(0)
    pkey, dkey = jax.random.split(key)
    params = init_params(pkey, vocab_size)
    packed = prepare_params(params, T)          # hoisted out of the per-forward jit
    input_ids = jax.random.randint(dkey, (B, T), 0, vocab_size, dtype=jnp.int32)

    out = model_forward(input_ids, packed)
    out = jax.block_until_ready(out)

    assert out.shape == (B, T, vocab_size), out.shape
    assert bool(jnp.all(jnp.isfinite(out)))
    print("KERNEL_OK")
</pallas_src>

<mosaic_0001>
module attributes {stable_mosaic.version = 11 : i64} {
  func.func @model_kernel(%arg0: i32, %arg1: memref<8x256xf32, #tpu.memory_space<vmem>>, %arg2: memref<256x768xf32, #tpu.memory_space<vmem>>, %arg3: memref<256x256xf32, #tpu.memory_space<vmem>>, %arg4: memref<256x256xf32, #tpu.memory_space<vmem>>, %arg5: memref<256x256xf32, #tpu.memory_space<vmem>>, %arg6: memref<8x256xf32, #tpu.memory_space<vmem>>, %arg7: memref<8x256xf32, #tpu.memory_space<vmem>>) attributes {dimension_semantics = [#tpu.dimension_semantics<parallel>], iteration_bounds = array<i64: 1>, scalar_prefetch = 0 : i64, scratch_operands = 0 : i64, tpu.core_type = #tpu.core_type<tc>, window_params = [{transform_indices = @transform_0, window_bounds = array<i64: 8, 256>}, {pipeline_mode = #tpu.pipeline_mode<synchronous>, transform_indices = @transform_1, window_bounds = array<i64: 256, 768>}, {pipeline_mode = #tpu.pipeline_mode<synchronous>, transform_indices = @transform_2, window_bounds = array<i64: 256, 256>}, {pipeline_mode = #tpu.pipeline_mode<synchronous>, transform_indices = @transform_3, window_bounds = array<i64: 256, 256>}, {pipeline_mode = #tpu.pipeline_mode<synchronous>, transform_indices = @transform_4, window_bounds = array<i64: 256, 256>}, {pipeline_mode = #tpu.pipeline_mode<synchronous>, transform_indices = @transform_5, window_bounds = array<i64: 8, 256>}, {transform_indices = @transform_6, window_bounds = array<i64: 8, 256>}]} {
    %c0 = arith.constant 0 : index
    %c0_0 = arith.constant 0 : index
    %0 = vector.load %arg4[%c0, %c0_0] : memref<256x256xf32, #tpu.memory_space<vmem>>, vector<256x256xf32>
    %c0_1 = arith.constant 0 : index
    %c0_2 = arith.constant 0 : index
    %1 = vector.load %arg5[%c0_1, %c0_2] : memref<256x256xf32, #tpu.memory_space<vmem>>, vector<256x256xf32>
    %c0_3 = arith.constant 0 : index
    %c0_4 = arith.constant 0 : index
    %2 = vector.load %arg1[%c0_3, %c0_4] : memref<8x256xf32, #tpu.memory_space<vmem>>, vector<8x256xf32>
    %c0_5 = arith.constant 0 : index
    %c0_6 = arith.constant 0 : index
    %3 = vector.load %arg2[%c0_5, %c0_6] : memref<256x768xf32, #tpu.memory_space<vmem>>, vector<256x768xf32>
    %cst = arith.constant dense<0.000000e+00> : vector<8x768xf32>
    %4 = tpu.matmul %2, %3, %cst {dimension_numbers = #tpu.dot_dimension_numbers<[1], [0], [0], [1], [0, 0, 1, 1], [], []>} : vector<8x256xf32>, vector<256x768xf32>, vector<8x768xf32> -> vector<8x768xf32>
    %5 = vector.extract_strided_slice %4 {offsets = [0, 0], sizes = [8, 256], strides = [1, 1]} : vector<8x768xf32> to vector<8x256xf32>
    %c0_7 = arith.constant 0 : index
    %c0_8 = arith.constant 0 : index
    %6 = vector.load %arg6[%c0_7, %c0_8] : memref<8x256xf32, #tpu.memory_space<vmem>>, vector<1x256xf32>
    %7 = vector.broadcast %6 : vector<1x256xf32> to vector<8x256xf32>
    %8 = arith.addf %5, %7 : vector<8x256xf32>
    %9 = vector.extract_strided_slice %4 {offsets = [0, 256], sizes = [8, 256], strides = [1, 1]} : vector<8x768xf32> to vector<8x256xf32>
    %10 = vector.extract_strided_slice %4 {offsets = [0, 512], sizes = [8, 256], strides = [1, 1]} : vector<8x768xf32> to vector<8x256xf32>
    %cst_9 = arith.constant dense<0.000000e+00> : vector<8x256xf32>
    %11 = tpu.matmul %8, %0, %cst_9 {dimension_numbers = #tpu.dot_dimension_numbers<[1], [0], [0], [1], [0, 0, 1, 1], [], []>} : vector<8x256xf32>, vector<256x256xf32>, vector<8x256xf32> -> vector<8x256xf32>
    %12 = arith.subf %8, %11 : vector<8x256xf32>
    %13 = arith.mulf %12, %12 : vector<8x256xf32>
    %cst_10 = arith.constant dense<0.000000e+00> : vector<8x256xf32>
    %14 = tpu.matmul %13, %0, %cst_10 {dimension_numbers = #tpu.dot_dimension_numbers<[1], [0], [0], [1], [0, 0, 1, 1], [], []>} : vector<8x256xf32>, vector<256x256xf32>, vector<8x256xf32> -> vector<8x256xf32>
    %cst_11 = arith.constant 9.99999974E-6 : f32
    %15 = vector.broadcast %cst_11 : f32 to vector<8x256xf32>
    %16 = arith.addf %14, %15 : vector<8x256xf32>
    %17 = math.rsqrt %16 : vector<8x256xf32>
    %18 = arith.mulf %12, %17 : vector<8x256xf32>
    %19 = arith.mulf %18, %9 : vector<8x256xf32>
    %20 = arith.addf %19, %10 : vector<8x256xf32>
    %cst_12 = arith.constant dense<0.000000e+00> : vector<8x256xf32>
    %21 = tpu.matmul %20, %0, %cst_12 {dimension_numbers = #tpu.dot_dimension_numbers<[1], [0], [0], [1], [0, 0, 1, 1], [], []>} : vector<8x256xf32>, vector<256x256xf32>, vector<8x256xf32> -> vector<8x256xf32>
    %22 = arith.subf %20, %21 : vector<8x256xf32>
    %23 = arith.mulf %22, %22 : vector<8x256xf32>
    %cst_13 = arith.constant dense<0.000000e+00> : vector<8x256xf32>
    %24 = tpu.matmul %23, %0, %cst_13 {dimension_numbers = #tpu.dot_dimension_numbers<[1], [0], [0], [1], [0, 0, 1, 1], [], []>} : vector<8x256xf32>, vector<256x256xf32>, vector<8x256xf32> -> vector<8x256xf32>
    %cst_14 = arith.constant 9.99999974E-6 : f32
    %25 = vector.broadcast %cst_14 : f32 to vector<8x256xf32>
    %26 = arith.addf %24, %25 : vector<8x256xf32>
    %27 = math.rsqrt %26 : vector<8x256xf32>
    %28 = arith.mulf %22, %27 : vector<8x256xf32>
    %c1 = arith.constant 1 : index
    %c0_15 = arith.constant 0 : index
    %29 = vector.load %arg6[%c1, %c0_15] : memref<8x256xf32, #tpu.memory_space<vmem>>, vector<1x256xf32>
    %30 = vector.broadcast %29 : vector<1x256xf32> to vector<8x256xf32>
    %31 = arith.mulf %28, %30 : vector<8x256xf32>
    %c2 = arith.constant 2 : index
    %c0_16 = arith.constant 0 : index
    %32 = vector.load %arg6[%c2, %c0_16] : memref<8x256xf32, #tpu.memory_space<vmem>>, vector<1x256xf32>
    %33 = vector.broadcast %32 : vector<1x256xf32> to vector<8x256xf32>
    %34 = arith.addf %31, %33 : vector<8x256xf32>
    %c0_17 = arith.constant 0 : index
    %c0_18 = arith.constant 0 : index
    %35 = vector.load %arg3[%c0_17, %c0_18] : memref<256x256xf32, #tpu.memory_space<vmem>>, vector<256x256xf32>
    %cst_19 = arith.constant dense<0.000000e+00> : vector<8x256xf32>
    %36 = tpu.matmul %34, %35, %cst_19 {dimension_numbers = #tpu.dot_dimension_numbers<[1], [0], [0], [1], [0, 0, 1, 1], [], []>} : vector<8x256xf32>, vector<256x256xf32>, vector<8x256xf32> -> vector<8x256xf32>
    %c3 = arith.constant 3 : index
    %c0_20 = arith.constant 0 : index
    %37 = vector.load %arg6[%c3, %c0_20] : memref<8x256xf32, #tpu.memory_space<vmem>>, vector<1x256xf32>
    %38 = vector.broadcast %37 : vector<1x256xf32> to vector<8x256xf32>
    %39 = arith.addf %36, %38 : vector<8x256xf32>
    %cst_21 = arith.constant dense<0.000000e+00> : vector<8x256xf32>
    %40 = tpu.matmul %39, %1, %cst_21 {dimension_numbers = #tpu.dot_dimension_numbers<[1], [0], [0], [1], [0, 0, 1, 1], [], []>} : vector<8x256xf32>, vector<256x256xf32>, vector<8x256xf32> -> vector<8x256xf32>
    %41 = arith.subf %39, %40 : vector<8x256xf32>
    %42 = arith.mulf %41, %41 : vector<8x256xf32>
    %cst_22 = arith.constant dense<0.000000e+00> : vector<8x256xf32>
    %43 = tpu.matmul %42, %1, %cst_22 {dimension_numbers = #tpu.dot_dimension_numbers<[1], [0], [0], [1], [0, 0, 1, 1], [], []>} : vector<8x256xf32>, vector<256x256xf32>, vector<8x256xf32> -> vector<8x256xf32>
    %cst_23 = arith.constant 9.99999974E-6 : f32
    %44 = vector.broadcast %cst_23 : f32 to vector<8x256xf32>
    %45 = arith.addf %43, %44 : vector<8x256xf32>
    %46 = math.rsqrt %45 : vector<8x256xf32>
    %47 = arith.mulf %41, %46 : vector<8x256xf32>
    %c4 = arith.constant 4 : index
    %c0_24 = arith.constant 0 : index
    %48 = vector.load %arg6[%c4, %c0_24] : memref<8x256xf32, #tpu.memory_space<vmem>>, vector<1x256xf32>
    %49 = vector.broadcast %48 : vector<1x256xf32> to vector<8x256xf32>
    %50 = arith.mulf %47, %49 : vector<8x256xf32>
    %c5 = arith.constant 5 : index
    %c0_25 = arith.constant 0 : index
    %51 = vector.load %arg6[%c5, %c0_25] : memref<8x256xf32, #tpu.memory_space<vmem>>, vector<1x256xf32>
    %52 = vector.broadcast %51 : vector<1x256xf32> to vector<8x256xf32>
    %53 = arith.addf %50, %52 : vector<8x256xf32>
    %cst_26 = arith.constant 0.000000e+00 : f32
    %54 = vector.broadcast %cst_26 : f32 to vector<8x256xf32>
    %55 = arith.cmpf oge, %53, %54 : vector<8x256xf32>
    %cst_27 = arith.constant 0.00999999977 : f32
    %56 = vector.broadcast %cst_27 : f32 to vector<8x256xf32>
    %57 = arith.mulf %56, %53 : vector<8x256xf32>
    %58 = arith.select %55, %53, %57 : vector<8x256xi1>, vector<8x256xf32>
    %c0_28 = arith.constant 0 : index
    %c0_29 = arith.constant 0 : index
    %59 = vector.load %arg7[%c0_28, %c0_29] : memref<8x256xf32, #tpu.memory_space<vmem>>, vector<8x256xf32>
    tpu.vector_store %arg7[%c0_28, %c0_29], %58 {strides = array<i32>} : memref<8x256xf32, #tpu.memory_space<vmem>>, vector<8x256xf32>,
    return
  }
  func.func @transform_0(%arg0: i32) -> (i32, i32) {
    %c0_i32 = arith.constant 0 : i32
    %c0_i32_0 = arith.constant 0 : i32
    return %arg0, %c0_i32 : i32, i32
  }
  func.func @transform_1(%arg0: i32) -> (i32, i32) {
    %c0_i32 = arith.constant 0 : i32
    %c0_i32_0 = arith.constant 0 : i32
    %c0_i32_1 = arith.constant 0 : i32
    return %c0_i32, %c0_i32_0 : i32, i32
  }
  func.func @transform_2(%arg0: i32) -> (i32, i32) {
    %c0_i32 = arith.constant 0 : i32
    %c0_i32_0 = arith.constant 0 : i32
    %c0_i32_1 = arith.constant 0 : i32
    return %c0_i32, %c0_i32_0 : i32, i32
  }
  func.func @transform_3(%arg0: i32) -> (i32, i32) {
    %c0_i32 = arith.constant 0 : i32
    %c0_i32_0 = arith.constant 0 : i32
    %c0_i32_1 = arith.constant 0 : i32
    return %c0_i32, %c0_i32_0 : i32, i32
  }
  func.func @transform_4(%arg0: i32) -> (i32, i32) {
    %c0_i32 = arith.constant 0 : i32
    %c0_i32_0 = arith.constant 0 : i32
    %c0_i32_1 = arith.constant 0 : i32
    return %c0_i32, %c0_i32_0 : i32, i32
  }
  func.func @transform_5(%arg0: i32) -> (i32, i32) {
    %c0_i32 = arith.constant 0 : i32
    %c0_i32_0 = arith.constant 0 : i32
    %c0_i32_1 = arith.constant 0 : i32
    return %c0_i32, %c0_i32_0 : i32, i32
  }
  func.func @transform_6(%arg0: i32) -> (i32, i32) {
    %c0_i32 = arith.constant 0 : i32
    %c0_i32_0 = arith.constant 0 : i32
    return %arg0, %c0_i32 : i32, i32
  }
}

</mosaic_0001>

<llo_original>
// kernel: _forward.1
$region0: #{_forward.1}
  #allocation0 [shape = 'u32[]', space=smem, size = 0x4, offset = 0x4, fixed_abs, tag = 'smem constant byte address 0x4 - core index']
  #allocation1 [shape = 'u32[144,128]{1,0:T(1,128)}', space=vmem, size = 0x12000, scoped, tag = 'internal scratch']
  %s0 = inlined_call_operand.vmem [shape: f32[8,256], index: 0, kind: input, shape index: {}]
  %s1 = inlined_call_operand.hbm [shape: f32[256,768], index: 1, kind: input, shape index: {}]
  %s2 = inlined_call_operand.hbm [shape: f32[256,256], index: 2, kind: input, shape index: {}]
  %s3 = inlined_call_operand.hbm [shape: f32[256,256], index: 3, kind: input, shape index: {}]
  %s4 = inlined_call_operand.hbm [shape: f32[256,256], index: 4, kind: input, shape index: {}]
  %s5 = inlined_call_operand.vmem [shape: f32[8,256], index: 5, kind: input, shape index: {}]
  %s6 = inlined_call_operand.vmem [shape: f32[8,256], index: 6, kind: output, shape index: {}]
  %s7 = sld [smem:[#allocation0]]
  $region50: #{_forward.1} parent=0
    _
  %s9 = ssub.s32 1, %s7
  %s10 = scalar_select 0, %s9, %s7
  $region1: #{_forward.1} parent=0
    #allocation2 [shape = 'u8[786432]{0}', space=vmem, size = 0xc0000, scoped, tag = 'input window, operand 1, single buffered']
    #allocation3 [shape = 's32[1]{0}', space=sflag, size = 0x4, scoped, tag = 'scoped memory for _forward.1']
    #allocation4 [shape = 'u8[262144]{0}', space=vmem, size = 0x40000, scoped, tag = 'input window, operand 2, single buffered']
    #allocation5 [shape = 's32[1]{0}', space=sflag, size = 0x4, scoped, tag = 'scoped memory for _forward.1']
    #allocation6 [shape = 'u8[262144]{0}', space=vmem, size = 0x40000, scoped, tag = 'input window, operand 3, single buffered']
    #allocation7 [shape = 'u8[262144]{0}', space=vmem, size = 0x40000, scoped, tag = 'input window, operand 4, single buffered']
    #allocation8 [shape = 's32[1]{0}', space=sflag, size = 0x4, scoped, tag = 'scoped memory for _forward.1']
    %11 = vsyncpa [#allocation3], 0
    %12 = vsyncpa [#allocation5], 0
    %13 = vsyncpa [#allocation8], 0
    // Predicated region
    $region2: #{_forward.1} parent=1 // pred_check
      _
    $region3: #{_forward.1} parent=1 // pred_check_branch
      %15 = sbr.rel (0) target = $region5
    $region4: #{_forward.1} parent=1 // pred_region
      _
    $region5: #{_forward.1} parent=1 // pred_fallthru
      _
    // Predicated region
    $region6: #{_forward.1} parent=1 // pred_check
      _
    $region7: #{_forward.1} parent=1 // pred_check_branch
      %17 = sbr.rel (0) target = $region9
    $region8: #{_forward.1} parent=1 // pred_region
      %s19 = ssub.s32 24576, 24576
      %20 = vsyncadd [#allocation3], %s19
      %s21 = sshll.u32 [#allocation2], 4
      %s22 = int_to_ptr.vmem [resolvable:$true] %s21
      %27 = dma.hbm_to_vmem [thread:$0]  %s1, 24576, %s22, [#allocation3], 768, 768, 48
    $region9: #{_forward.1} parent=1 // pred_fallthru
      _
    // Predicated region
    $region10: #{_forward.1} parent=1 // pred_check
      _
    $region11: #{_forward.1} parent=1 // pred_check_branch
      %29 = sbr.rel (0) target = $region13
    $region12: #{_forward.1} parent=1 // pred_region
      %s31 = ssub.s32 8192, 8192
      %32 = vsyncadd [#allocation5], %s31
      %s33 = sshll.u32 [#allocation4], 4
      %s34 = int_to_ptr.vmem [resolvable:$true] %s33
      %39 = dma.hbm_to_vmem [thread:$0]  %s2, 8192, %s34, [#allocation5], 256, 256, 16
    $region13: #{_forward.1} parent=1 // pred_fallthru
      _
    // Predicated region
    $region14: #{_forward.1} parent=1 // pred_check
      _
    $region15: #{_forward.1} parent=1 // pred_check_branch
      %41 = sbr.rel (0) target = $region17
    $region16: #{_forward.1} parent=1 // pred_region
      %s43 = ssub.s32 8192, 8192
      %44 = vsyncadd [#allocation5], %s43
      %s45 = sshll.u32 [#allocation6], 4
      %s46 = int_to_ptr.vmem [resolvable:$true] %s45
      %51 = dma.hbm_to_vmem [thread:$0]  %s3, 8192, %s46, [#allocation5], 256, 256, 16
    $region17: #{_forward.1} parent=1 // pred_fallthru
      _
    // Predicated region
    $region18: #{_forward.1} parent=1 // pred_check
      _
    $region19: #{_forward.1} parent=1 // pred_check_branch
      %53 = sbr.rel (0) target = $region21
    $region20: #{_forward.1} parent=1 // pred_region
      %s55 = ssub.s32 8192, 8192
      %56 = vsyncadd [#allocation8], %s55
      %s57 = sshll.u32 [#allocation7], 4
      %s58 = int_to_ptr.vmem [resolvable:$true] %s57
      %63 = dma.hbm_to_vmem [thread:$0]  %s4, 8192, %s58, [#allocation8], 256, 256, 16
    $region21: #{_forward.1} parent=1 // pred_fallthru
      _
    // Predicated region
    $region22: #{_forward.1} parent=1 // pred_check
      _
    $region23: #{_forward.1} parent=1 // pred_check_branch
      %65 = sbr.rel (0) target = $region25
    $region24: #{_forward.1} parent=1 // pred_region
      _
    $region25: #{_forward.1} parent=1 // pred_fallthru
      _
    // Predicated region
    $region26: #{_forward.1} parent=1 // pred_check
      _
    $region27: #{_forward.1} parent=1 // pred_check_branch
      %67 = sbr.rel (0) target = $region29
    $region28: #{_forward.1} parent=1 // pred_region
      %68 = dma.done [#allocation3], 24576
    $region29: #{_forward.1} parent=1 // pred_fallthru
      _
    // Predicated region
    $region30: #{_forward.1} parent=1 // pred_check
      _
    $region31: #{_forward.1} parent=1 // pred_check_branch
      %70 = sbr.rel (0) target = $region33
    $region32: #{_forward.1} parent=1 // pred_region
      %71 = dma.done [#allocation5], 8192
    $region33: #{_forward.1} parent=1 // pred_fallthru
      _
    // Predicated region
    $region34: #{_forward.1} parent=1 // pred_check
      _
    $region35: #{_forward.1} parent=1 // pred_check_branch
      %73 = sbr.rel (0) target = $region37
    $region36: #{_forward.1} parent=1 // pred_region
      %74 = dma.done [#allocation5], 8192
    $region37: #{_forward.1} parent=1 // pred_fallthru
      _
    // Predicated region
    $region38: #{_forward.1} parent=1 // pred_check
      _
    $region39: #{_forward.1} parent=1 // pred_check_branch
      %76 = sbr.rel (0) target = $region41
    $region40: #{_forward.1} parent=1 // pred_region
      %77 = dma.done [#allocation8], 8192
    $region41: #{_forward.1} parent=1 // pred_fallthru
      _
    %v78 = vld [vmem:[#allocation6] sm:$0xff]
    %v79 = vld [vmem:[#allocation6 + $0x8] sm:$0xff]
    %v80 = vld [vmem:[#allocation6 + $0x10] sm:$0xff]
    %v81 = vld [vmem:[#allocation6 + $0x18] sm:$0xff]
    %v82 = vld [vmem:[#allocation6 + $0x20] sm:$0xff]
    %v83 = vld [vmem:[#allocation6 + $0x28] sm:$0xff]
    %v84 = vld [vmem:[#allocation6 + $0x30] sm:$0xff]
    %v85 = vld [vmem:[#allocation6 + $0x38] sm:$0xff]
    %v86 = vld [vmem:[#allocation6 + $0x40] sm:$0xff]
    %v87 = vld [vmem:[#allocation6 + $0x48] sm:$0xff]
    %v88 = vld [vmem:[#allocation6 + $0x50] sm:$0xff]
    %v89 = vld [vmem:[#allocation6 + $0x58] sm:$0xff]
    %v90 = vld [vmem:[#allocation6 + $0x60] sm:$0xff]
    %v91 = vld [vmem:[#allocation6 + $0x68] sm:$0xff]
    %v92 = vld [vmem:[#allocation6 + $0x70] sm:$0xff]
    %v93 = vld [vmem:[#allocation6 + $0x78] sm:$0xff]
    %v94 = vld [vmem:[#allocation6 + $0x80] sm:$0xff]
    %v95 = vld [vmem:[#allocation6 + $0x88] sm:$0xff]
    %v96 = vld [vmem:[#allocation6 + $0x90] sm:$0xff]
    %v97 = vld [vmem:[#allocation6 + $0x98] sm:$0xff]
    %v98 = vld [vmem:[#allocation6 + $0xa0] sm:$0xff]
    %v99 = vld [vmem:[#allocation6 + $0xa8] sm:$0xff]
    %v100 = vld [vmem:[#allocation6 + $0xb0] sm:$0xff]
    %v101 = vld [vmem:[#allocation6 + $0xb8] sm:$0xff]
    %v102 = vld [vmem:[#allocation6 + $0xc0] sm:$0xff]
    %v103 = vld [vmem:[#allocation6 + $0xc8] sm:$0xff]
    %v104 = vld [vmem:[#allocation6 + $0xd0] sm:$0xff]
    %v105 = vld [vmem:[#allocation6 + $0xd8] sm:$0xff]
    %v106 = vld [vmem:[#allocation6 + $0xe0] sm:$0xff]
    %v107 = vld [vmem:[#allocation6 + $0xe8] sm:$0xff]
    %v108 = vld [vmem:[#allocation6 + $0xf0] sm:$0xff]
    %v109 = vld [vmem:[#allocation6 + $0xf8] sm:$0xff]
    %v110 = vld [vmem:[#allocation6 + $0x100] sm:$0xff]
    %v111 = vld [vmem:[#allocation6 + $0x108] sm:$0xff]
    %v112 = vld [vmem:[#allocation6 + $0x110] sm:$0xff]
    %v113 = vld [vmem:[#allocation6 + $0x118] sm:$0xff]
    %v114 = vld [vmem:[#allocation6 + $0x120] sm:$0xff]
    %v115 = vld [vmem:[#allocation6 + $0x128] sm:$0xff]
    %v116 = vld [vmem:[#allocation6 + $0x130] sm:$0xff]
    %v117 = vld [vmem:[#allocation6 + $0x138] sm:$0xff]
    %v118 = vld [vmem:[#allocation6 + $0x140] sm:$0xff]
    %v119 = vld [vmem:[#allocation6 + $0x148] sm:$0xff]
    %v120 = vld [vmem:[#allocation6 + $0x150] sm:$0xff]
    %v121 = vld [vmem:[#allocation6 + $0x158] sm:$0xff]
    %v122 = vld [vmem:[#allocation6 + $0x160] sm:$0xff]
    %v123 = vld [vmem:[#allocation6 + $0x168] sm:$0xff]
    %v124 = vld [vmem:[#allocation6 + $0x170] sm:$0xff]
    %v125 = vld [vmem:[#allocation6 + $0x178] sm:$0xff]
    %v126 = vld [vmem:[#allocation6 + $0x180] sm:$0xff]
    %v127 = vld [vmem:[#allocation6 + $0x188] sm:$0xff]
    %v128 = vld [vmem:[#allocation6 + $0x190] sm:$0xff]
    %v129 = vld [vmem:[#allocation6 + $0x198] sm:$0xff]
    %v130 = vld [vmem:[#allocation6 + $0x1a0] sm:$0xff]
    %v131 = vld [vmem:[#allocation6 + $0x1a8] sm:$0xff]
    %v132 = vld [vmem:[#allocation6 + $0x1b0] sm:$0xff]
    %v133 = vld [vmem:[#allocation6 + $0x1b8] sm:$0xff]
    %v134 = vld [vmem:[#allocation6 + $0x1c0] sm:$0xff]
    %v135 = vld [vmem:[#allocation6 + $0x1c8] sm:$0xff]
    %v136 = vld [vmem:[#allocation6 + $0x1d0] sm:$0xff]
    %v137 = vld [vmem:[#allocation6 + $0x1d8] sm:$0xff]
    %v138 = vld [vmem:[#allocation6 + $0x1e0] sm:$0xff]
    %v139 = vld [vmem:[#allocation6 + $0x1e8] sm:$0xff]
    %v140 = vld [vmem:[#allocation6 + $0x1f0] sm:$0xff]
    %v141 = vld [vmem:[#allocation6 + $0x1f8] sm:$0xff]
    %v142 = vld [vmem:[#allocation7] sm:$0xff]
    %v143 = vld [vmem:[#allocation7 + $0x8] sm:$0xff]
    %v144 = vld [vmem:[#allocation7 + $0x10] sm:$0xff]
    %v145 = vld [vmem:[#allocation7 + $0x18] sm:$0xff]
    %v146 = vld [vmem:[#allocation7 + $0x20] sm:$0xff]
    %v147 = vld [vmem:[#allocation7 + $0x28] sm:$0xff]
    %v148 = vld [vmem:[#allocation7 + $0x30] sm:$0xff]
    %v149 = vld [vmem:[#allocation7 + $0x38] sm:$0xff]
    %v150 = vld [vmem:[#allocation7 + $0x40] sm:$0xff]
    %v151 = vld [vmem:[#allocation7 + $0x48] sm:$0xff]
    %v152 = vld [vmem:[#allocation7 + $0x50] sm:$0xff]
    %v153 = vld [vmem:[#allocation7 + $0x58] sm:$0xff]
    %v154 = vld [vmem:[#allocation7 + $0x60] sm:$0xff]
    %v155 = vld [vmem:[#allocation7 + $0x68] sm:$0xff]
    %v156 = vld [vmem:[#allocation7 + $0x70] sm:$0xff]
    %v157 = vld [vmem:[#allocation7 + $0x78] sm:$0xff]
    %v158 = vld [vmem:[#allocation7 + $0x80] sm:$0xff]
    %v159 = vld [vmem:[#allocation7 + $0x88] sm:$0xff]
    %v160 = vld [vmem:[#allocation7 + $0x90] sm:$0xff]
    %v161 = vld [vmem:[#allocation7 + $0x98] sm:$0xff]
    %v162 = vld [vmem:[#allocation7 + $0xa0] sm:$0xff]
    %v163 = vld [vmem:[#allocation7 + $0xa8] sm:$0xff]
    %v164 = vld [vmem:[#allocation7 + $0xb0] sm:$0xff]
    %v165 = vld [vmem:[#allocation7 + $0xb8] sm:$0xff]
    %v166 = vld [vmem:[#allocation7 + $0xc0] sm:$0xff]
    %v167 = vld [vmem:[#allocation7 + $0xc8] sm:$0xff]
    %v168 = vld [vmem:[#allocation7 + $0xd0] sm:$0xff]
    %v169 = vld [vmem:[#allocation7 + $0xd8] sm:$0xff]
    %v170 = vld [vmem:[#allocation7 + $0xe0] sm:$0xff]
    %v171 = vld [vmem:[#allocation7 + $0xe8] sm:$0xff]
    %v172 = vld [vmem:[#allocation7 + $0xf0] sm:$0xff]
    %v173 = vld [vmem:[#allocation7 + $0xf8] sm:$0xff]
    %v174 = vld [vmem:[#allocation7 + $0x100] sm:$0xff]
    %v175 = vld [vmem:[#allocation7 + $0x108] sm:$0xff]
    %v176 = vld [vmem:[#allocation7 + $0x110] sm:$0xff]
    %v177 = vld [vmem:[#allocation7 + $0x118] sm:$0xff]
    %v178 = vld [vmem:[#allocation7 + $0x120] sm:$0xff]
    %v179 = vld [vmem:[#allocation7 + $0x128] sm:$0xff]
    %v180 = vld [vmem:[#allocation7 + $0x130] sm:$0xff]
    %v181 = vld [vmem:[#allocation7 + $0x138] sm:$0xff]
    %v182 = vld [vmem:[#allocation7 + $0x140] sm:$0xff]
    %v183 = vld [vmem:[#allocation7 + $0x148] sm:$0xff]
    %v184 = vld [vmem:[#allocation7 + $0x150] sm:$0xff]
    %v185 = vld [vmem:[#allocation7 + $0x158] sm:$0xff]
    %v186 = vld [vmem:[#allocation7 + $0x160] sm:$0xff]
    %v187 = vld [vmem:[#allocation7 + $0x168] sm:$0xff]
    %v188 = vld [vmem:[#allocation7 + $0x170] sm:$0xff]
    %v189 = vld [vmem:[#allocation7 + $0x178] sm:$0xff]
    %v190 = vld [vmem:[#allocation7 + $0x180] sm:$0xff]
    %v191 = vld [vmem:[#allocation7 + $0x188] sm:$0xff]
    %v192 = vld [vmem:[#allocation7 + $0x190] sm:$0xff]
    %v193 = vld [vmem:[#allocation7 + $0x198] sm:$0xff]
    %v194 = vld [vmem:[#allocation7 + $0x1a0] sm:$0xff]
    %v195 = vld [vmem:[#allocation7 + $0x1a8] sm:$0xff]
    %v196 = vld [vmem:[#allocation7 + $0x1b0] sm:$0xff]
    %v197 = vld [vmem:[#allocation7 + $0x1b8] sm:$0xff]
    %v198 = vld [vmem:[#allocation7 + $0x1c0] sm:$0xff]
    %v199 = vld [vmem:[#allocation7 + $0x1c8] sm:$0xff]
    %v200 = vld [vmem:[#allocation7 + $0x1d0] sm:$0xff]
    %v201 = vld [vmem:[#allocation7 + $0x1d8] sm:$0xff]
    %v202 = vld [vmem:[#allocation7 + $0x1e0] sm:$0xff]
    %v203 = vld [vmem:[#allocation7 + $0x1e8] sm:$0xff]
    %v204 = vld [vmem:[#allocation7 + $0x1f0] sm:$0xff]
    %v205 = vld [vmem:[#allocation7 + $0x1f8] sm:$0xff]
    %v206 = vld [vmem:[%s0] sm:$0xff]
    %v207 = vld [vmem:[%s0 + $0x8] sm:$0xff]
    %v208 = vld [vmem:[#allocation2] sm:$0xff]
    %v209 = vld [vmem:[#allocation2 + $0x8] sm:$0xff]
    %v210 = vld [vmem:[#allocation2 + $0x10] sm:$0xff]
    %v211 = vld [vmem:[#allocation2 + $0x18] sm:$0xff]
    %v212 = vld [vmem:[#allocation2 + $0x20] sm:$0xff]
    %v213 = vld [vmem:[#allocation2 + $0x28] sm:$0xff]
    %v214 = vld [vmem:[#allocation2 + $0x30] sm:$0xff]
    %v215 = vld [vmem:[#allocation2 + $0x38] sm:$0xff]
    %v216 = vld [vmem:[#allocation2 + $0x40] sm:$0xff]
    %v217 = vld [vmem:[#allocation2 + $0x48] sm:$0xff]
    %v218 = vld [vmem:[#allocation2 + $0x50] sm:$0xff]
    %v219 = vld [vmem:[#allocation2 + $0x58] sm:$0xff]
    %v220 = vld [vmem:[#allocation2 + $0x60] sm:$0xff]
    %v221 = vld [vmem:[#allocation2 + $0x68] sm:$0xff]
    %v222 = vld [vmem:[#allocation2 + $0x70] sm:$0xff]
    %v223 = vld [vmem:[#allocation2 + $0x78] sm:$0xff]
    %v224 = vld [vmem:[#allocation2 + $0x80] sm:$0xff]
    %v225 = vld [vmem:[#allocation2 + $0x88] sm:$0xff]
    %v226 = vld [vmem:[#allocation2 + $0x90] sm:$0xff]
    %v227 = vld [vmem:[#allocation2 + $0x98] sm:$0xff]
    %v228 = vld [vmem:[#allocation2 + $0xa0] sm:$0xff]
    %v229 = vld [vmem:[#allocation2 + $0xa8] sm:$0xff]
    %v230 = vld [vmem:[#allocation2 + $0xb0] sm:$0xff]
    %v231 = vld [vmem:[#allocation2 + $0xb8] sm:$0xff]
    %v232 = vld [vmem:[#allocation2 + $0xc0] sm:$0xff]
    %v233 = vld [vmem:[#allocation2 + $0xc8] sm:$0xff]
    %v234 = vld [vmem:[#allocation2 + $0xd0] sm:$0xff]
    %v235 = vld [vmem:[#allocation2 + $0xd8] sm:$0xff]
    %v236 = vld [vmem:[#allocation2 + $0xe0] sm:$0xff]
    %v237 = vld [vmem:[#allocation2 + $0xe8] sm:$0xff]
    %v238 = vld [vmem:[#allocation2 + $0xf0] sm:$0xff]
    %v239 = vld [vmem:[#allocation2 + $0xf8] sm:$0xff]
    %v240 = vld [vmem:[#allocation2 + $0x100] sm:$0xff]
    %v241 = vld [vmem:[#allocation2 + $0x108] sm:$0xff]
    %v242 = vld [vmem:[#allocation2 + $0x110] sm:$0xff]
    %v243 = vld [vmem:[#allocation2 + $0x118] sm:$0xff]
    %v244 = vld [vmem:[#allocation2 + $0x120] sm:$0xff]
    %v245 = vld [vmem:[#allocation2 + $0x128] sm:$0xff]
    %v246 = vld [vmem:[#allocation2 + $0x130] sm:$0xff]
    %v247 = vld [vmem:[#allocation2 + $0x138] sm:$0xff]
    %v248 = vld [vmem:[#allocation2 + $0x140] sm:$0xff]
    %v249 = vld [vmem:[#allocation2 + $0x148] sm:$0xff]
    %v250 = vld [vmem:[#allocation2 + $0x150] sm:$0xff]
    %v251 = vld [vmem:[#allocation2 + $0x158] sm:$0xff]
    %v252 = vld [vmem:[#allocation2 + $0x160] sm:$0xff]
    %v253 = vld [vmem:[#allocation2 + $0x168] sm:$0xff]
    %v254 = vld [vmem:[#allocation2 + $0x170] sm:$0xff]
    %v255 = vld [vmem:[#allocation2 + $0x178] sm:$0xff]
    %v256 = vld [vmem:[#allocation2 + $0x180] sm:$0xff]
    %v257 = vld [vmem:[#allocation2 + $0x188] sm:$0xff]
    %v258 = vld [vmem:[#allocation2 + $0x190] sm:$0xff]
    %v259 = vld [vmem:[#allocation2 + $0x198] sm:$0xff]
    %v260 = vld [vmem:[#allocation2 + $0x1a0] sm:$0xff]
    %v261 = vld [vmem:[#allocation2 + $0x1a8] sm:$0xff]
    %v262 = vld [vmem:[#allocation2 + $0x1b0] sm:$0xff]
    %v263 = vld [vmem:[#allocation2 + $0x1b8] sm:$0xff]
    %v264 = vld [vmem:[#allocation2 + $0x1c0] sm:$0xff]
    %v265 = vld [vmem:[#allocation2 + $0x1c8] sm:$0xff]
    %v266 = vld [vmem:[#allocation2 + $0x1d0] sm:$0xff]
    %v267 = vld [vmem:[#allocation2 + $0x1d8] sm:$0xff]
    %v268 = vld [vmem:[#allocation2 + $0x1e0] sm:$0xff]
    %v269 = vld [vmem:[#allocation2 + $0x1e8] sm:$0xff]
    %v270 = vld [vmem:[#allocation2 + $0x1f0] sm:$0xff]
    %v271 = vld [vmem:[#allocation2 + $0x1f8] sm:$0xff]
    %v272 = vld [vmem:[#allocation2 + $0x200] sm:$0xff]
    %v273 = vld [vmem:[#allocation2 + $0x208] sm:$0xff]
    %v274 = vld [vmem:[#allocation2 + $0x210] sm:$0xff]
    %v275 = vld [vmem:[#allocation2 + $0x218] sm:$0xff]
    %v276 = vld [vmem:[#allocation2 + $0x220] sm:$0xff]
    %v277 = vld [vmem:[#allocation2 + $0x228] sm:$0xff]
    %v278 = vld [vmem:[#allocation2 + $0x230] sm:$0xff]
    %v279 = vld [vmem:[#allocation2 + $0x238] sm:$0xff]
    %v280 = vld [vmem:[#allocation2 + $0x240] sm:$0xff]
    %v281 = vld [vmem:[#allocation2 + $0x248] sm:$0xff]
    %v282 = vld [vmem:[#allocation2 + $0x250] sm:$0xff]
    %v283 = vld [vmem:[#allocation2 + $0x258] sm:$0xff]
    %v284 = vld [vmem:[#allocation2 + $0x260] sm:$0xff]
    %v285 = vld [vmem:[#allocation2 + $0x268] sm:$0xff]
    %v286 = vld [vmem:[#allocation2 + $0x270] sm:$0xff]
    %v287 = vld [vmem:[#allocation2 + $0x278] sm:$0xff]
    %v288 = vld [vmem:[#allocation2 + $0x280] sm:$0xff]
    %v289 = vld [vmem:[#allocation2 + $0x288] sm:$0xff]
    %v290 = vld [vmem:[#allocation2 + $0x290] sm:$0xff]
    %v291 = vld [vmem:[#allocation2 + $0x298] sm:$0xff]
    %v292 = vld [vmem:[#allocation2 + $0x2a0] sm:$0xff]
    %v293 = vld [vmem:[#allocation2 + $0x2a8] sm:$0xff]
    %v294 = vld [vmem:[#allocation2 + $0x2b0] sm:$0xff]
    %v295 = vld [vmem:[#allocation2 + $0x2b8] sm:$0xff]
    %v296 = vld [vmem:[#allocation2 + $0x2c0] sm:$0xff]
    %v297 = vld [vmem:[#allocation2 + $0x2c8] sm:$0xff]
    %v298 = vld [vmem:[#allocation2 + $0x2d0] sm:$0xff]
    %v299 = vld [vmem:[#allocation2 + $0x2d8] sm:$0xff]
    %v300 = vld [vmem:[#allocation2 + $0x2e0] sm:$0xff]
    %v301 = vld [vmem:[#allocation2 + $0x2e8] sm:$0xff]
    %v302 = vld [vmem:[#allocation2 + $0x2f0] sm:$0xff]
    %v303 = vld [vmem:[#allocation2 + $0x2f8] sm:$0xff]
    %v304 = vld [vmem:[#allocation2 + $0x300] sm:$0xff]
    %v305 = vld [vmem:[#allocation2 + $0x308] sm:$0xff]
    %v306 = vld [vmem:[#allocation2 + $0x310] sm:$0xff]
    %v307 = vld [vmem:[#allocation2 + $0x318] sm:$0xff]
    %v308 = vld [vmem:[#allocation2 + $0x320] sm:$0xff]
    %v309 = vld [vmem:[#allocation2 + $0x328] sm:$0xff]
    %v310 = vld [vmem:[#allocation2 + $0x330] sm:$0xff]
    %v311 = vld [vmem:[#allocation2 + $0x338] sm:$0xff]
    %v312 = vld [vmem:[#allocation2 + $0x340] sm:$0xff]
    %v313 = vld [vmem:[#allocation2 + $0x348] sm:$0xff]
    %v314 = vld [vmem:[#allocation2 + $0x350] sm:$0xff]
    %v315 = vld [vmem:[#allocation2 + $0x358] sm:$0xff]
    %v316 = vld [vmem:[#allocation2 + $0x360] sm:$0xff]
    %v317 = vld [vmem:[#allocation2 + $0x368] sm:$0xff]
    %v318 = vld [vmem:[#allocation2 + $0x370] sm:$0xff]
    %v319 = vld [vmem:[#allocation2 + $0x378] sm:$0xff]
    %v320 = vld [vmem:[#allocation2 + $0x380] sm:$0xff]
    %v321 = vld [vmem:[#allocation2 + $0x388] sm:$0xff]
    %v322 = vld [vmem:[#allocation2 + $0x390] sm:$0xff]
    %v323 = vld [vmem:[#allocation2 + $0x398] sm:$0xff]
    %v324 = vld [vmem:[#allocation2 + $0x3a0] sm:$0xff]
    %v325 = vld [vmem:[#allocation2 + $0x3a8] sm:$0xff]
    %v326 = vld [vmem:[#allocation2 + $0x3b0] sm:$0xff]
    %v327 = vld [vmem:[#allocation2 + $0x3b8] sm:$0xff]
    %v328 = vld [vmem:[#allocation2 + $0x3c0] sm:$0xff]
    %v329 = vld [vmem:[#allocation2 + $0x3c8] sm:$0xff]
    %v330 = vld [vmem:[#allocation2 + $0x3d0] sm:$0xff]
    %v331 = vld [vmem:[#allocation2 + $0x3d8] sm:$0xff]
    %v332 = vld [vmem:[#allocation2 + $0x3e0] sm:$0xff]
    %v333 = vld [vmem:[#allocation2 + $0x3e8] sm:$0xff]
    %v334 = vld [vmem:[#allocation2 + $0x3f0] sm:$0xff]
    %v335 = vld [vmem:[#allocation2 + $0x3f8] sm:$0xff]
    %v336 = vld [vmem:[#allocation2 + $0x400] sm:$0xff]
    %v337 = vld [vmem:[#allocation2 + $0x408] sm:$0xff]
    %v338 = vld [vmem:[#allocation2 + $0x410] sm:$0xff]
    %v339 = vld [vmem:[#allocation2 + $0x418] sm:$0xff]
    %v340 = vld [vmem:[#allocation2 + $0x420] sm:$0xff]
    %v341 = vld [vmem:[#allocation2 + $0x428] sm:$0xff]
    %v342 = vld [vmem:[#allocation2 + $0x430] sm:$0xff]
    %v343 = vld [vmem:[#allocation2 + $0x438] sm:$0xff]
    %v344 = vld [vmem:[#allocation2 + $0x440] sm:$0xff]
    %v345 = vld [vmem:[#allocation2 + $0x448] sm:$0xff]
    %v346 = vld [vmem:[#allocation2 + $0x450] sm:$0xff]
    %v347 = vld [vmem:[#allocation2 + $0x458] sm:$0xff]
    %v348 = vld [vmem:[#allocation2 + $0x460] sm:$0xff]
    %v349 = vld [vmem:[#allocation2 + $0x468] sm:$0xff]
    %v350 = vld [vmem:[#allocation2 + $0x470] sm:$0xff]
    %v351 = vld [vmem:[#allocation2 + $0x478] sm:$0xff]
    %v352 = vld [vmem:[#allocation2 + $0x480] sm:$0xff]
    %v353 = vld [vmem:[#allocation2 + $0x488] sm:$0xff]
    %v354 = vld [vmem:[#allocation2 + $0x490] sm:$0xff]
    %v355 = vld [vmem:[#allocation2 + $0x498] sm:$0xff]
    %v356 = vld [vmem:[#allocation2 + $0x4a0] sm:$0xff]
    %v357 = vld [vmem:[#allocation2 + $0x4a8] sm:$0xff]
    %v358 = vld [vmem:[#allocation2 + $0x4b0] sm:$0xff]
    %v359 = vld [vmem:[#allocation2 + $0x4b8] sm:$0xff]
    %v360 = vld [vmem:[#allocation2 + $0x4c0] sm:$0xff]
    %v361 = vld [vmem:[#allocation2 + $0x4c8] sm:$0xff]
    %v362 = vld [vmem:[#allocation2 + $0x4d0] sm:$0xff]
    %v363 = vld [vmem:[#allocation2 + $0x4d8] sm:$0xff]
    %v364 = vld [vmem:[#allocation2 + $0x4e0] sm:$0xff]
    %v365 = vld [vmem:[#allocation2 + $0x4e8] sm:$0xff]
    %v366 = vld [vmem:[#allocation2 + $0x4f0] sm:$0xff]
    %v367 = vld [vmem:[#allocation2 + $0x4f8] sm:$0xff]
    %v368 = vld [vmem:[#allocation2 + $0x500] sm:$0xff]
    %v369 = vld [vmem:[#allocation2 + $0x508] sm:$0xff]
    %v370 = vld [vmem:[#allocation2 + $0x510] sm:$0xff]
    %v371 = vld [vmem:[#allocation2 + $0x518] sm:$0xff]
    %v372 = vld [vmem:[#allocation2 + $0x520] sm:$0xff]
    %v373 = vld [vmem:[#allocation2 + $0x528] sm:$0xff]
    %v374 = vld [vmem:[#allocation2 + $0x530] sm:$0xff]
    %v375 = vld [vmem:[#allocation2 + $0x538] sm:$0xff]
    %v376 = vld [vmem:[#allocation2 + $0x540] sm:$0xff]
    %v377 = vld [vmem:[#allocation2 + $0x548] sm:$0xff]
    %v378 = vld [vmem:[#allocation2 + $0x550] sm:$0xff]
    %v379 = vld [vmem:[#allocation2 + $0x558] sm:$0xff]
    %v380 = vld [vmem:[#allocation2 + $0x560] sm:$0xff]
    %v381 = vld [vmem:[#allocation2 + $0x568] sm:$0xff]
    %v382 = vld [vmem:[#allocation2 + $0x570] sm:$0xff]
    %v383 = vld [vmem:[#allocation2 + $0x578] sm:$0xff]
    %v384 = vld [vmem:[#allocation2 + $0x580] sm:$0xff]
    %v385 = vld [vmem:[#allocation2 + $0x588] sm:$0xff]
    %v386 = vld [vmem:[#allocation2 + $0x590] sm:$0xff]
    %v387 = vld [vmem:[#allocation2 + $0x598] sm:$0xff]
    %v388 = vld [vmem:[#allocation2 + $0x5a0] sm:$0xff]
    %v389 = vld [vmem:[#allocation2 + $0x5a8] sm:$0xff]
    %v390 = vld [vmem:[#allocation2 + $0x5b0] sm:$0xff]
    %v391 = vld [vmem:[#allocation2 + $0x5b8] sm:$0xff]
    %v392 = vld [vmem:[#allocation2 + $0x5c0] sm:$0xff]
    %v393 = vld [vmem:[#allocation2 + $0x5c8] sm:$0xff]
    %v394 = vld [vmem:[#allocation2 + $0x5d0] sm:$0xff]
    %v395 = vld [vmem:[#allocation2 + $0x5d8] sm:$0xff]
    %v396 = vld [vmem:[#allocation2 + $0x5e0] sm:$0xff]
    %v397 = vld [vmem:[#allocation2 + $0x5e8] sm:$0xff]
    %v398 = vld [vmem:[#allocation2 + $0x5f0] sm:$0xff]
    %v399 = vld [vmem:[#allocation2 + $0x5f8] sm:$0xff]
    %400 = vmatprep.subr.mxu0 %v209
    %401 = vmatpush1.msra.mxu0 %v208
    %402 = vmatprep.subr.mxu0 %v215
    %403 = vmatpush1.msra.mxu0 %v214
    %404 = vmatprep.subr.mxu0 %v221
    %405 = vmatpush1.msra.mxu0 %v220
    %406 = vmatprep.subr.mxu0 %v227
    %407 = vmatpush1.msra.mxu0 %v226
    %408 = vmatprep.subr.mxu0 %v233
    %409 = vmatpush1.msra.mxu0 %v232
    %410 = vmatprep.subr.mxu0 %v239
    %411 = vmatpush1.msra.mxu0 %v238
    %412 = vmatprep.subr.mxu0 %v245
    %413 = vmatpush1.msra.mxu0 %v244
    %414 = vmatprep.subr.mxu0 %v251
    %415 = vmatpush1.msra.mxu0 %v250
    %416 = vmatprep.subr.mxu0 %v257
    %417 = vmatpush1.msra.mxu0 %v256
    %418 = vmatprep.subr.mxu0 %v263
    %419 = vmatpush1.msra.mxu0 %v262
    %420 = vmatprep.subr.mxu0 %v269
    %421 = vmatpush1.msra.mxu0 %v268
    %422 = vmatprep.subr.mxu0 %v275
    %423 = vmatpush1.msra.mxu0 %v274
    %424 = vmatprep.subr.mxu0 %v281
    %425 = vmatpush1.msra.mxu0 %v280
    %426 = vmatprep.subr.mxu0 %v287
    %427 = vmatpush1.msra.mxu0 %v286
    %428 = vmatprep.subr.mxu0 %v293
    %429 = vmatpush1.msra.mxu0 %v292
    %430 = vmatprep.subr.mxu0 %v299
    %431 = vmatpush1.msra.mxu0 %v298
    %432 = vmatprep.subr.mxu0 %v305
    %433 = vmatpush1.msra.mxu0 %v304
    %434 = vmatprep.subr.mxu0 %v311
    %435 = vmatpush1.msra.mxu0 %v310
    %436 = vmatprep.subr.mxu0 %v317
    %437 = vmatpush1.msra.mxu0 %v316
    %438 = vmatprep.subr.mxu0 %v323
    %439 = vmatpush1.msra.mxu0 %v322
    %440 = vmatprep.subr.mxu0 %v329
    %441 = vmatpush1.msra.mxu0 %v328
    %442 = vmatprep.subr.mxu0 %v335
    %443 = vmatpush1.msra.mxu0 %v334
    %444 = vmatprep.subr.mxu0 %v341
    %445 = vmatpush1.msra.mxu0 %v340
    %446 = vmatprep.subr.mxu0 %v347
    %447 = vmatpush1.msra.mxu0 %v346
    %448 = vmatprep.subr.mxu0 %v353
    %449 = vmatpush1.msra.mxu0 %v352
    %450 = vmatprep.subr.mxu0 %v359
    %451 = vmatpush1.msra.mxu0 %v358
    %452 = vmatprep.subr.mxu0 %v365
    %453 = vmatpush1.msra.mxu0 %v364
    %454 = vmatprep.subr.mxu0 %v371
    %455 = vmatpush1.msra.mxu0 %v370
    %456 = vmatprep.subr.mxu0 %v377
    %457 = vmatpush1.msra.mxu0 %v376
    %458 = vmatprep.subr.mxu0 %v383
    %459 = vmatpush1.msra.mxu0 %v382
    %460 = vmatprep.subr.mxu0 %v389
    %461 = vmatpush1.msra.mxu0 %v388
    %462 = vmatprep.subr.mxu0 %v395
    %463 = vmatpush1.msra.mxu0 %v394
    %464 = vmatprep.mubr.f32.mxu0 %v207
    %465 = vmatmul.mubr.f32.gmra.mrb[0].mxu0 %v206
    %v466 = vpop.f32.mrb[0].mxu0
    %v467 = vadd.f32 0.0, %v466
    %v468 = vpop.f32.mrb[0].mxu0
    %v469 = vadd.f32 0.0, %v468
    %470 = vdwg.mxu0
    %471 = vmatprep.subr.mxu0 %v211
    %472 = vmatpush1.msra.mxu0 %v210
    %473 = vmatprep.subr.mxu0 %v217
    %474 = vmatpush1.msra.mxu0 %v216
    %475 = vmatprep.subr.mxu0 %v223
    %476 = vmatpush1.msra.mxu0 %v222
    %477 = vmatprep.subr.mxu0 %v229
    %478 = vmatpush1.msra.mxu0 %v228
    %479 = vmatprep.subr.mxu0 %v235
    %480 = vmatpush1.msra.mxu0 %v234
    %481 = vmatprep.subr.mxu0 %v241
    %482 = vmatpush1.msra.mxu0 %v240
    %483 = vmatprep.subr.mxu0 %v247
    %484 = vmatpush1.msra.mxu0 %v246
    %485 = vmatprep.subr.mxu0 %v253
    %486 = vmatpush1.msra.mxu0 %v252
    %487 = vmatprep.subr.mxu0 %v259
    %488 = vmatpush1.msra.mxu0 %v258
    %489 = vmatprep.subr.mxu0 %v265
    %490 = vmatpush1.msra.mxu0 %v264
    %491 = vmatprep.subr.mxu0 %v271
    %492 = vmatpush1.msra.mxu0 %v270
    %493 = vmatprep.subr.mxu0 %v277
    %494 = vmatpush1.msra.mxu0 %v276
    %495 = vmatprep.subr.mxu0 %v283
    %496 = vmatpush1.msra.mxu0 %v282
    %497 = vmatprep.subr.mxu0 %v289
    %498 = vmatpush1.msra.mxu0 %v288
    %499 = vmatprep.subr.mxu0 %v295
    %500 = vmatpush1.msra.mxu0 %v294
    %501 = vmatprep.subr.mxu0 %v301
    %502 = vmatpush1.msra.mxu0 %v300
    %503 = vmatprep.subr.mxu0 %v307
    %504 = vmatpush1.msra.mxu0 %v306
    %505 = vmatprep.subr.mxu0 %v313
    %506 = vmatpush1.msra.mxu0 %v312
    %507 = vmatprep.subr.mxu0 %v319
    %508 = vmatpush1.msra.mxu0 %v318
    %509 = vmatprep.subr.mxu0 %v325
    %510 = vmatpush1.msra.mxu0 %v324
    %511 = vmatprep.subr.mxu0 %v331
    %512 = vmatpush1.msra.mxu0 %v330
    %513 = vmatprep.subr.mxu0 %v337
    %514 = vmatpush1.msra.mxu0 %v336
    %515 = vmatprep.subr.mxu0 %v343
    %516 = vmatpush1.msra.mxu0 %v342
    %517 = vmatprep.subr.mxu0 %v349
    %518 = vmatpush1.msra.mxu0 %v348
    %519 = vmatprep.subr.mxu0 %v355
    %520 = vmatpush1.msra.mxu0 %v354
    %521 = vmatprep.subr.mxu0 %v361
    %522 = vmatpush1.msra.mxu0 %v360
    %523 = vmatprep.subr.mxu0 %v367
    %524 = vmatpush1.msra.mxu0 %v366
    %525 = vmatprep.subr.mxu0 %v373
    %526 = vmatpush1.msra.mxu0 %v372
    %527 = vmatprep.subr.mxu0 %v379
    %528 = vmatpush1.msra.mxu0 %v378
    %529 = vmatprep.subr.mxu0 %v385
    %530 = vmatpush1.msra.mxu0 %v384
    %531 = vmatprep.subr.mxu0 %v391
    %532 = vmatpush1.msra.mxu0 %v390
    %533 = vmatprep.subr.mxu0 %v397
    %534 = vmatpush1.msra.mxu0 %v396
    %535 = vmatprep.mubr.f32.mxu0 %v207
    %536 = vmatmul.mubr.f32.gmra.mrb[0].mxu0 %v206
    %v537 = vpop.f32.mrb[0].mxu0
    %v538 = vadd.f32 0.0, %v537
    %v539 = vpop.f32.mrb[0].mxu0
    %v540 = vadd.f32 0.0, %v539
    %541 = vdwg.mxu0
    %542 = vmatprep.subr.mxu0 %v213
    %543 = vmatpush1.msra.mxu0 %v212
    %544 = vmatprep.subr.mxu0 %v219
    %545 = vmatpush1.msra.mxu0 %v218
    %546 = vmatprep.subr.mxu0 %v225
    %547 = vmatpush1.msra.mxu0 %v224
    %548 = vmatprep.subr.mxu0 %v231
    %549 = vmatpush1.msra.mxu0 %v230
    %550 = vmatprep.subr.mxu0 %v237
    %551 = vmatpush1.msra.mxu0 %v236
    %552 = vmatprep.subr.mxu0 %v243
    %553 = vmatpush1.msra.mxu0 %v242
    %554 = vmatprep.subr.mxu0 %v249
    %555 = vmatpush1.msra.mxu0 %v248
    %556 = vmatprep.subr.mxu0 %v255
    %557 = vmatpush1.msra.mxu0 %v254
    %558 = vmatprep.subr.mxu0 %v261
    %559 = vmatpush1.msra.mxu0 %v260
    %560 = vmatprep.subr.mxu0 %v267
    %561 = vmatpush1.msra.mxu0 %v266
    %562 = vmatprep.subr.mxu0 %v273
    %563 = vmatpush1.msra.mxu0 %v272
    %564 = vmatprep.subr.mxu0 %v279
    %565 = vmatpush1.msra.mxu0 %v278
    %566 = vmatprep.subr.mxu0 %v285
    %567 = vmatpush1.msra.mxu0 %v284
    %568 = vmatprep.subr.mxu0 %v291
    %569 = vmatpush1.msra.mxu0 %v290
    %570 = vmatprep.subr.mxu0 %v297
    %571 = vmatpush1.msra.mxu0 %v296
    %572 = vmatprep.subr.mxu0 %v303
    %573 = vmatpush1.msra.mxu0 %v302
    %574 = vmatprep.subr.mxu0 %v309
    %575 = vmatpush1.msra.mxu0 %v308
    %576 = vmatprep.subr.mxu0 %v315
    %577 = vmatpush1.msra.mxu0 %v314
    %578 = vmatprep.subr.mxu0 %v321
    %579 = vmatpush1.msra.mxu0 %v320
    %580 = vmatprep.subr.mxu0 %v327
    %581 = vmatpush1.msra.mxu0 %v326
    %582 = vmatprep.subr.mxu0 %v333
    %583 = vmatpush1.msra.mxu0 %v332
    %584 = vmatprep.subr.mxu0 %v339
    %585 = vmatpush1.msra.mxu0 %v338
    %586 = vmatprep.subr.mxu0 %v345
    %587 = vmatpush1.msra.mxu0 %v344
    %588 = vmatprep.subr.mxu0 %v351
    %589 = vmatpush1.msra.mxu0 %v350
    %590 = vmatprep.subr.mxu0 %v357
    %591 = vmatpush1.msra.mxu0 %v356
    %592 = vmatprep.subr.mxu0 %v363
    %593 = vmatpush1.msra.mxu0 %v362
    %594 = vmatprep.subr.mxu0 %v369
    %595 = vmatpush1.msra.mxu0 %v368
    %596 = vmatprep.subr.mxu0 %v375
    %597 = vmatpush1.msra.mxu0 %v374
    %598 = vmatprep.subr.mxu0 %v381
    %599 = vmatpush1.msra.mxu0 %v380
    %600 = vmatprep.subr.mxu0 %v387
    %601 = vmatpush1.msra.mxu0 %v386
    %602 = vmatprep.subr.mxu0 %v393
    %603 = vmatpush1.msra.mxu0 %v392
    %604 = vmatprep.subr.mxu0 %v399
    %605 = vmatpush1.msra.mxu0 %v398
    %606 = vmatprep.mubr.f32.mxu0 %v207
    %607 = vmatmul.mubr.f32.gmra.mrb[0].mxu0 %v206
    %v608 = vpop.f32.mrb[0].mxu0
    %v609 = vadd.f32 0.0, %v608
    %v610 = vpop.f32.mrb[0].mxu0
    %v611 = vadd.f32 0.0, %v610
    %612 = vdwg.mxu0
    %v613 = vld [vmem:[%s5] ss:$8 sm:$0x3]
    %v615 = vlaneseq
    %v616 = vshrl.u32 %v615, 7
    %v617 = vsub.s32 0, %v616
    %v618 = vrot.slane %v613, %v617
    %v619 = vlaneseq
    %v620 = vshrl.u32 %v619, 7
    %v621 = vsub.s32 1, %v620
    %v622 = vrot.slane %v613, %v621
    %v625 = vadd.f32 %v467, %v618
    %v626 = vadd.f32 %v469, %v622
    %627 = vmatprep.subr.mxu0 %v79
    %628 = vmatpush1.msra.mxu0 %v78
    %629 = vmatprep.subr.mxu0 %v81
    %630 = vmatpush1.msra.mxu0 %v80
    %631 = vmatprep.subr.mxu0 %v83
    %632 = vmatpush1.msra.mxu0 %v82
    %633 = vmatprep.subr.mxu0 %v85
    %634 = vmatpush1.msra.mxu0 %v84
    %635 = vmatprep.subr.mxu0 %v87
    %636 = vmatpush1.msra.mxu0 %v86
    %637 = vmatprep.subr.mxu0 %v89
    %638 = vmatpush1.msra.mxu0 %v88
    %639 = vmatprep.subr.mxu0 %v91
    %640 = vmatpush1.msra.mxu0 %v90
    %641 = vmatprep.subr.mxu0 %v93
    %642 = vmatpush1.msra.mxu0 %v92
    %643 = vmatprep.subr.mxu0 %v95
    %644 = vmatpush1.msra.mxu0 %v94
    %645 = vmatprep.subr.mxu0 %v97
    %646 = vmatpush1.msra.mxu0 %v96
    %647 = vmatprep.subr.mxu0 %v99
    %648 = vmatpush1.msra.mxu0 %v98
    %649 = vmatprep.subr.mxu0 %v101
    %650 = vmatpush1.msra.mxu0 %v100
    %651 = vmatprep.subr.mxu0 %v103
    %652 = vmatpush1.msra.mxu0 %v102
    %653 = vmatprep.subr.mxu0 %v105
    %654 = vmatpush1.msra.mxu0 %v104
    %655 = vmatprep.subr.mxu0 %v107
    %656 = vmatpush1.msra.mxu0 %v106
    %657 = vmatprep.subr.mxu0 %v109
    %658 = vmatpush1.msra.mxu0 %v108
    %659 = vmatprep.subr.mxu0 %v111
    %660 = vmatpush1.msra.mxu0 %v110
    %661 = vmatprep.subr.mxu0 %v113
    %662 = vmatpush1.msra.mxu0 %v112
    %663 = vmatprep.subr.mxu0 %v115
    %664 = vmatpush1.msra.mxu0 %v114
    %665 = vmatprep.subr.mxu0 %v117
    %666 = vmatpush1.msra.mxu0 %v116
    %667 = vmatprep.subr.mxu0 %v119
    %668 = vmatpush1.msra.mxu0 %v118
    %669 = vmatprep.subr.mxu0 %v121
    %670 = vmatpush1.msra.mxu0 %v120
    %671 = vmatprep.subr.mxu0 %v123
    %672 = vmatpush1.msra.mxu0 %v122
    %673 = vmatprep.subr.mxu0 %v125
    %674 = vmatpush1.msra.mxu0 %v124
    %675 = vmatprep.subr.mxu0 %v127
    %676 = vmatpush1.msra.mxu0 %v126
    %677 = vmatprep.subr.mxu0 %v129
    %678 = vmatpush1.msra.mxu0 %v128
    %679 = vmatprep.subr.mxu0 %v131
    %680 = vmatpush1.msra.mxu0 %v130
    %681 = vmatprep.subr.mxu0 %v133
    %682 = vmatpush1.msra.mxu0 %v132
    %683 = vmatprep.subr.mxu0 %v135
    %684 = vmatpush1.msra.mxu0 %v134
    %685 = vmatprep.subr.mxu0 %v137
    %686 = vmatpush1.msra.mxu0 %v136
    %687 = vmatprep.subr.mxu0 %v139
    %688 = vmatpush1.msra.mxu0 %v138
    %689 = vmatprep.subr.mxu0 %v141
    %690 = vmatpush1.msra.mxu0 %v140
    %691 = vmatprep.mubr.f32.mxu0 %v626
    %692 = vmatmul.mubr.f32.gmra.mrb[0].mxu0 %v625
    %v693 = vpop.f32.mrb[0].mxu0
    %v694 = vadd.f32 0.0, %v693
    %v695 = vpop.f32.mrb[0].mxu0
    %v696 = vadd.f32 0.0, %v695
    %697 = vdwg.mxu0
    %v698 = vsub.f32 %v625, %v694
    %v699 = vsub.f32 %v626, %v696
    %v700 = vmul.f32 %v698, %v698
    %v701 = vmul.f32 %v699, %v699
    %702 = vmatprep.subr.mxu0 %v79
    %703 = vmatpush1.msra.mxu0 %v78
    %704 = vmatprep.subr.mxu0 %v81
    %705 = vmatpush1.msra.mxu0 %v80
    %706 = vmatprep.subr.mxu0 %v83
    %707 = vmatpush1.msra.mxu0 %v82
    %708 = vmatprep.subr.mxu0 %v85
    %709 = vmatpush1.msra.mxu0 %v84
    %710 = vmatprep.subr.mxu0 %v87
    %711 = vmatpush1.msra.mxu0 %v86
    %712 = vmatprep.subr.mxu0 %v89
    %713 = vmatpush1.msra.mxu0 %v88
    %714 = vmatprep.subr.mxu0 %v91
    %715 = vmatpush1.msra.mxu0 %v90
    %716 = vmatprep.subr.mxu0 %v93
    %717 = vmatpush1.msra.mxu0 %v92
    %718 = vmatprep.subr.mxu0 %v95
    %719 = vmatpush1.msra.mxu0 %v94
    %720 = vmatprep.subr.mxu0 %v97
    %721 = vmatpush1.msra.mxu0 %v96
    %722 = vmatprep.subr.mxu0 %v99
    %723 = vmatpush1.msra.mxu0 %v98
    %724 = vmatprep.subr.mxu0 %v101
    %725 = vmatpush1.msra.mxu0 %v100
    %726 = vmatprep.subr.mxu0 %v103
    %727 = vmatpush1.msra.mxu0 %v102
    %728 = vmatprep.subr.mxu0 %v105
    %729 = vmatpush1.msra.mxu0 %v104
    %730 = vmatprep.subr.mxu0 %v107
    %731 = vmatpush1.msra.mxu0 %v106
    %732 = vmatprep.subr.mxu0 %v109
    %733 = vmatpush1.msra.mxu0 %v108
    %734 = vmatprep.subr.mxu0 %v111
    %735 = vmatpush1.msra.mxu0 %v110
    %736 = vmatprep.subr.mxu0 %v113
    %737 = vmatpush1.msra.mxu0 %v112
    %738 = vmatprep.subr.mxu0 %v115
    %739 = vmatpush1.msra.mxu0 %v114
    %740 = vmatprep.subr.mxu0 %v117
    %741 = vmatpush1.msra.mxu0 %v116
    %742 = vmatprep.subr.mxu0 %v119
    %743 = vmatpush1.msra.mxu0 %v118
    %744 = vmatprep.subr.mxu0 %v121
    %745 = vmatpush1.msra.mxu0 %v120
    %746 = vmatprep.subr.mxu0 %v123
    %747 = vmatpush1.msra.mxu0 %v122
    %748 = vmatprep.subr.mxu0 %v125
    %749 = vmatpush1.msra.mxu0 %v124
    %750 = vmatprep.subr.mxu0 %v127
    %751 = vmatpush1.msra.mxu0 %v126
    %752 = vmatprep.subr.mxu0 %v129
    %753 = vmatpush1.msra.mxu0 %v128
    %754 = vmatprep.subr.mxu0 %v131
    %755 = vmatpush1.msra.mxu0 %v130
    %756 = vmatprep.subr.mxu0 %v133
    %757 = vmatpush1.msra.mxu0 %v132
    %758 = vmatprep.subr.mxu0 %v135
    %759 = vmatpush1.msra.mxu0 %v134
    %760 = vmatprep.subr.mxu0 %v137
    %761 = vmatpush1.msra.mxu0 %v136
    %762 = vmatprep.subr.mxu0 %v139
    %763 = vmatpush1.msra.mxu0 %v138
    %764 = vmatprep.subr.mxu0 %v141
    %765 = vmatpush1.msra.mxu0 %v140
    %766 = vmatprep.mubr.f32.mxu0 %v701
    %767 = vmatmul.mubr.f32.gmra.mrb[0].mxu0 %v700
    %v768 = vpop.f32.mrb[0].mxu0
    %v769 = vadd.f32 1e-05, %v768
    %v770 = vpop.f32.mrb[0].mxu0
    %v771 = vadd.f32 1e-05, %v770
    %772 = vdwg.mxu0
    %v773 = vrsqrt.pop %v769
    %v774 = vrsqrt.pop %v771
    %v775 = vmul.f32 %v698, %v773
    %v776 = vmul.f32 %v699, %v774
    %v777 = vmul.f32 %v775, %v538
    %v778 = vmul.f32 %v776, %v540
    %v779 = vadd.f32 %v777, %v609
    %v780 = vadd.f32 %v778, %v611
    %781 = vmatprep.subr.mxu0 %v79
    %782 = vmatpush1.msra.mxu0 %v78
    %783 = vmatprep.subr.mxu0 %v81
    %784 = vmatpush1.msra.mxu0 %v80
    %785 = vmatprep.subr.mxu0 %v83
    %786 = vmatpush1.msra.mxu0 %v82
    %787 = vmatprep.subr.mxu0 %v85
    %788 = vmatpush1.msra.mxu0 %v84
    %789 = vmatprep.subr.mxu0 %v87
    %790 = vmatpush1.msra.mxu0 %v86
    %791 = vmatprep.subr.mxu0 %v89
    %792 = vmatpush1.msra.mxu0 %v88
    %793 = vmatprep.subr.mxu0 %v91
    %794 = vmatpush1.msra.mxu0 %v90
    %795 = vmatprep.subr.mxu0 %v93
    %796 = vmatpush1.msra.mxu0 %v92
    %797 = vmatprep.subr.mxu0 %v95
    %798 = vmatpush1.msra.mxu0 %v94
    %799 = vmatprep.subr.mxu0 %v97
    %800 = vmatpush1.msra.mxu0 %v96
    %801 = vmatprep.subr.mxu0 %v99
    %802 = vmatpush1.msra.mxu0 %v98
    %803 = vmatprep.subr.mxu0 %v101
    %804 = vmatpush1.msra.mxu0 %v100
    %805 = vmatprep.subr.mxu0 %v103
    %806 = vmatpush1.msra.mxu0 %v102
    %807 = vmatprep.subr.mxu0 %v105
    %808 = vmatpush1.msra.mxu0 %v104
    %809 = vmatprep.subr.mxu0 %v107
    %810 = vmatpush1.msra.mxu0 %v106
    %811 = vmatprep.subr.mxu0 %v109
    %812 = vmatpush1.msra.mxu0 %v108
    %813 = vmatprep.subr.mxu0 %v111
    %814 = vmatpush1.msra.mxu0 %v110
    %815 = vmatprep.subr.mxu0 %v113
    %816 = vmatpush1.msra.mxu0 %v112
    %817 = vmatprep.subr.mxu0 %v115
    %818 = vmatpush1.msra.mxu0 %v114
    %819 = vmatprep.subr.mxu0 %v117
    %820 = vmatpush1.msra.mxu0 %v116
    %821 = vmatprep.subr.mxu0 %v119
    %822 = vmatpush1.msra.mxu0 %v118
    %823 = vmatprep.subr.mxu0 %v121
    %824 = vmatpush1.msra.mxu0 %v120
    %825 = vmatprep.subr.mxu0 %v123
    %826 = vmatpush1.msra.mxu0 %v122
    %827 = vmatprep.subr.mxu0 %v125
    %828 = vmatpush1.msra.mxu0 %v124
    %829 = vmatprep.subr.mxu0 %v127
    %830 = vmatpush1.msra.mxu0 %v126
    %831 = vmatprep.subr.mxu0 %v129
    %832 = vmatpush1.msra.mxu0 %v128
    %833 = vmatprep.subr.mxu0 %v131
    %834 = vmatpush1.msra.mxu0 %v130
    %835 = vmatprep.subr.mxu0 %v133
    %836 = vmatpush1.msra.mxu0 %v132
    %837 = vmatprep.subr.mxu0 %v135
    %838 = vmatpush1.msra.mxu0 %v134
    %839 = vmatprep.subr.mxu0 %v137
    %840 = vmatpush1.msra.mxu0 %v136
    %841 = vmatprep.subr.mxu0 %v139
    %842 = vmatpush1.msra.mxu0 %v138
    %843 = vmatprep.subr.mxu0 %v141
    %844 = vmatpush1.msra.mxu0 %v140
    %845 = vmatprep.mubr.f32.mxu0 %v780
    %846 = vmatmul.mubr.f32.gmra.mrb[0].mxu0 %v779
    %v847 = vpop.f32.mrb[0].mxu0
    %v848 = vadd.f32 0.0, %v847
    %v849 = vpop.f32.mrb[0].mxu0
    %v850 = vadd.f32 0.0, %v849
    %851 = vdwg.mxu0
    %v852 = vsub.f32 %v779, %v848
    %v853 = vsub.f32 %v780, %v850
    %v854 = vmul.f32 %v852, %v852
    %v855 = vmul.f32 %v853, %v853
    %856 = vmatprep.subr.mxu0 %v79
    %857 = vmatpush1.msra.mxu0 %v78
    %858 = vmatprep.subr.mxu0 %v81
    %859 = vmatpush1.msra.mxu0 %v80
    %860 = vmatprep.subr.mxu0 %v83
    %861 = vmatpush1.msra.mxu0 %v82
    %862 = vmatprep.subr.mxu0 %v85
    %863 = vmatpush1.msra.mxu0 %v84
    %864 = vmatprep.subr.mxu0 %v87
    %865 = vmatpush1.msra.mxu0 %v86
    %866 = vmatprep.subr.mxu0 %v89
    %867 = vmatpush1.msra.mxu0 %v88
    %868 = vmatprep.subr.mxu0 %v91
    %869 = vmatpush1.msra.mxu0 %v90
    %870 = vmatprep.subr.mxu0 %v93
    %871 = vmatpush1.msra.mxu0 %v92
    %872 = vmatprep.subr.mxu0 %v95
    %873 = vmatpush1.msra.mxu0 %v94
    %874 = vmatprep.subr.mxu0 %v97
    %875 = vmatpush1.msra.mxu0 %v96
    %876 = vmatprep.subr.mxu0 %v99
    %877 = vmatpush1.msra.mxu0 %v98
    %878 = vmatprep.subr.mxu0 %v101
    %879 = vmatpush1.msra.mxu0 %v100
    %880 = vmatprep.subr.mxu0 %v103
    %881 = vmatpush1.msra.mxu0 %v102
    %882 = vmatprep.subr.mxu0 %v105
    %883 = vmatpush1.msra.mxu0 %v104
    %884 = vmatprep.subr.mxu0 %v107
    %885 = vmatpush1.msra.mxu0 %v106
    %886 = vmatprep.subr.mxu0 %v109
    %887 = vmatpush1.msra.mxu0 %v108
    %888 = vmatprep.subr.mxu0 %v111
    %889 = vmatpush1.msra.mxu0 %v110
    %890 = vmatprep.subr.mxu0 %v113
    %891 = vmatpush1.msra.mxu0 %v112
    %892 = vmatprep.subr.mxu0 %v115
    %893 = vmatpush1.msra.mxu0 %v114
    %894 = vmatprep.subr.mxu0 %v117
    %895 = vmatpush1.msra.mxu0 %v116
    %896 = vmatprep.subr.mxu0 %v119
    %897 = vmatpush1.msra.mxu0 %v118
    %898 = vmatprep.subr.mxu0 %v121
    %899 = vmatpush1.msra.mxu0 %v120
    %900 = vmatprep.subr.mxu0 %v123
    %901 = vmatpush1.msra.mxu0 %v122
    %902 = vmatprep.subr.mxu0 %v125
    %903 = vmatpush1.msra.mxu0 %v124
    %904 = vmatprep.subr.mxu0 %v127
    %905 = vmatpush1.msra.mxu0 %v126
    %906 = vmatprep.subr.mxu0 %v129
    %907 = vmatpush1.msra.mxu0 %v128
    %908 = vmatprep.subr.mxu0 %v131
    %909 = vmatpush1.msra.mxu0 %v130
    %910 = vmatprep.subr.mxu0 %v133
    %911 = vmatpush1.msra.mxu0 %v132
    %912 = vmatprep.subr.mxu0 %v135
    %913 = vmatpush1.msra.mxu0 %v134
    %914 = vmatprep.subr.mxu0 %v137
    %915 = vmatpush1.msra.mxu0 %v136
    %916 = vmatprep.subr.mxu0 %v139
    %917 = vmatpush1.msra.mxu0 %v138
    %918 = vmatprep.subr.mxu0 %v141
    %919 = vmatpush1.msra.mxu0 %v140
    %920 = vmatprep.mubr.f32.mxu0 %v855
    %921 = vmatmul.mubr.f32.gmra.mrb[0].mxu0 %v854
    %v922 = vpop.f32.mrb[0].mxu0
    %v923 = vadd.f32 1e-05, %v922
    %v924 = vpop.f32.mrb[0].mxu0
    %v925 = vadd.f32 1e-05, %v924
    %926 = vdwg.mxu0
    %v927 = vrsqrt.pop %v923
    %v928 = vrsqrt.pop %v925
    %v929 = vmul.f32 %v852, %v927
    %v930 = vmul.f32 %v853, %v928
    %s931 = scalar_lea.vmem %s5, 1
    %v932 = vld [vmem:[%s931] ss:$8 sm:$0x3]
    %v934 = vlaneseq
    %v935 = vshrl.u32 %v934, 7
    %v936 = vsub.s32 0, %v935
    %v937 = vrot.slane %v932, %v936
    %v938 = vlaneseq
    %v939 = vshrl.u32 %v938, 7
    %v940 = vsub.s32 1, %v939
    %v941 = vrot.slane %v932, %v940
    %v944 = vmul.f32 %v929, %v937
    %v945 = vmul.f32 %v930, %v941
    %s946 = scalar_lea.vmem %s5, 2
    %v947 = vld [vmem:[%s946] ss:$8 sm:$0x3]
    %v949 = vlaneseq
    %v950 = vshrl.u32 %v949, 7
    %v951 = vsub.s32 0, %v950
    %v952 = vrot.slane %v947, %v951
    %v953 = vlaneseq
    %v954 = vshrl.u32 %v953, 7
    %v955 = vsub.s32 1, %v954
    %v956 = vrot.slane %v947, %v955
    %v959 = vadd.f32 %v944, %v952
    %v960 = vadd.f32 %v945, %v956
    %v961 = vld [vmem:[#allocation4] sm:$0xff]
    %v962 = vld [vmem:[#allocation4 + $0x8] sm:$0xff]
    %v963 = vld [vmem:[#allocation4 + $0x10] sm:$0xff]
    %v964 = vld [vmem:[#allocation4 + $0x18] sm:$0xff]
    %v965 = vld [vmem:[#allocation4 + $0x20] sm:$0xff]
    %v966 = vld [vmem:[#allocation4 + $0x28] sm:$0xff]
    %v967 = vld [vmem:[#allocation4 + $0x30] sm:$0xff]
    %v968 = vld [vmem:[#allocation4 + $0x38] sm:$0xff]
    %v969 = vld [vmem:[#allocation4 + $0x40] sm:$0xff]
    %v970 = vld [vmem:[#allocation4 + $0x48] sm:$0xff]
    %v971 = vld [vmem:[#allocation4 + $0x50] sm:$0xff]
    %v972 = vld [vmem:[#allocation4 + $0x58] sm:$0xff]
    %v973 = vld [vmem:[#allocation4 + $0x60] sm:$0xff]
    %v974 = vld [vmem:[#allocation4 + $0x68] sm:$0xff]
    %v975 = vld [vmem:[#allocation4 + $0x70] sm:$0xff]
    %v976 = vld [vmem:[#allocation4 + $0x78] sm:$0xff]
    %v977 = vld [vmem:[#allocation4 + $0x80] sm:$0xff]
    %v978 = vld [vmem:[#allocation4 + $0x88] sm:$0xff]
    %v979 = vld [vmem:[#allocation4 + $0x90] sm:$0xff]
    %v980 = vld [vmem:[#allocation4 + $0x98] sm:$0xff]
    %v981 = vld [vmem:[#allocation4 + $0xa0] sm:$0xff]
    %v982 = vld [vmem:[#allocation4 + $0xa8] sm:$0xff]
    %v983 = vld [vmem:[#allocation4 + $0xb0] sm:$0xff]
    %v984 = vld [vmem:[#allocation4 + $0xb8] sm:$0xff]
    %v985 = vld [vmem:[#allocation4 + $0xc0] sm:$0xff]
    %v986 = vld [vmem:[#allocation4 + $0xc8] sm:$0xff]
    %v987 = vld [vmem:[#allocation4 + $0xd0] sm:$0xff]
    %v988 = vld [vmem:[#allocation4 + $0xd8] sm:$0xff]
    %v989 = vld [vmem:[#allocation4 + $0xe0] sm:$0xff]
    %v990 = vld [vmem:[#allocation4 + $0xe8] sm:$0xff]
    %v991 = vld [vmem:[#allocation4 + $0xf0] sm:$0xff]
    %v992 = vld [vmem:[#allocation4 + $0xf8] sm:$0xff]
    %v993 = vld [vmem:[#allocation4 + $0x100] sm:$0xff]
    %v994 = vld [vmem:[#allocation4 + $0x108] sm:$0xff]
    %v995 = vld [vmem:[#allocation4 + $0x110] sm:$0xff]
    %v996 = vld [vmem:[#allocation4 + $0x118] sm:$0xff]
    %v997 = vld [vmem:[#allocation4 + $0x120] sm:$0xff]
    %v998 = vld [vmem:[#allocation4 + $0x128] sm:$0xff]
    %v999 = vld [vmem:[#allocation4 + $0x130] sm:$0xff]
    %v1000 = vld [vmem:[#allocation4 + $0x138] sm:$0xff]
    %v1001 = vld [vmem:[#allocation4 + $0x140] sm:$0xff]
    %v1002 = vld [vmem:[#allocation4 + $0x148] sm:$0xff]
    %v1003 = vld [vmem:[#allocation4 + $0x150] sm:$0xff]
    %v1004 = vld [vmem:[#allocation4 + $0x158] sm:$0xff]
    %v1005 = vld [vmem:[#allocation4 + $0x160] sm:$0xff]
    %v1006 = vld [vmem:[#allocation4 + $0x168] sm:$0xff]
    %v1007 = vld [vmem:[#allocation4 + $0x170] sm:$0xff]
    %v1008 = vld [vmem:[#allocation4 + $0x178] sm:$0xff]
    %v1009 = vld [vmem:[#allocation4 + $0x180] sm:$0xff]
    %v1010 = vld [vmem:[#allocation4 + $0x188] sm:$0xff]
    %v1011 = vld [vmem:[#allocation4 + $0x190] sm:$0xff]
    %v1012 = vld [vmem:[#allocation4 + $0x198] sm:$0xff]
    %v1013 = vld [vmem:[#allocation4 + $0x1a0] sm:$0xff]
    %v1014 = vld [vmem:[#allocation4 + $0x1a8] sm:$0xff]
    %v1015 = vld [vmem:[#allocation4 + $0x1b0] sm:$0xff]
    %v1016 = vld [vmem:[#allocation4 + $0x1b8] sm:$0xff]
    %v1017 = vld [vmem:[#allocation4 + $0x1c0] sm:$0xff]
    %v1018 = vld [vmem:[#allocation4 + $0x1c8] sm:$0xff]
    %v1019 = vld [vmem:[#allocation4 + $0x1d0] sm:$0xff]
    %v1020 = vld [vmem:[#allocation4 + $0x1d8] sm:$0xff]
    %v1021 = vld [vmem:[#allocation4 + $0x1e0] sm:$0xff]
    %v1022 = vld [vmem:[#allocation4 + $0x1e8] sm:$0xff]
    %v1023 = vld [vmem:[#allocation4 + $0x1f0] sm:$0xff]
    %v1024 = vld [vmem:[#allocation4 + $0x1f8] sm:$0xff]
    %s1025 = scalar_lea.vmem %s5, 3
    %v1026 = vld [vmem:[%s1025] ss:$8 sm:$0x3]
    %v1028 = vlaneseq
    %v1029 = vshrl.u32 %v1028, 7
    %v1030 = vsub.s32 0, %v1029
    %v1031 = vrot.slane %v1026, %v1030
    %v1032 = vlaneseq
    %v1033 = vshrl.u32 %v1032, 7
    %v1034 = vsub.s32 1, %v1033
    %v1035 = vrot.slane %v1026, %v1034
    %1038 = vmatprep.subr.mxu0 %v962
    %1039 = vmatpush1.msra.mxu0 %v961
    %1040 = vmatprep.subr.mxu0 %v964
    %1041 = vmatpush1.msra.mxu0 %v963
    %1042 = vmatprep.subr.mxu0 %v966
    %1043 = vmatpush1.msra.mxu0 %v965
    %1044 = vmatprep.subr.mxu0 %v968
    %1045 = vmatpush1.msra.mxu0 %v967
    %1046 = vmatprep.subr.mxu0 %v970
    %1047 = vmatpush1.msra.mxu0 %v969
    %1048 = vmatprep.subr.mxu0 %v972
    %1049 = vmatpush1.msra.mxu0 %v971
    %1050 = vmatprep.subr.mxu0 %v974
    %1051 = vmatpush1.msra.mxu0 %v973
    %1052 = vmatprep.subr.mxu0 %v976
    %1053 = vmatpush1.msra.mxu0 %v975
    %1054 = vmatprep.subr.mxu0 %v978
    %1055 = vmatpush1.msra.mxu0 %v977
    %1056 = vmatprep.subr.mxu0 %v980
    %1057 = vmatpush1.msra.mxu0 %v979
    %1058 = vmatprep.subr.mxu0 %v982
    %1059 = vmatpush1.msra.mxu0 %v981
    %1060 = vmatprep.subr.mxu0 %v984
    %1061 = vmatpush1.msra.mxu0 %v983
    %1062 = vmatprep.subr.mxu0 %v986
    %1063 = vmatpush1.msra.mxu0 %v985
    %1064 = vmatprep.subr.mxu0 %v988
    %1065 = vmatpush1.msra.mxu0 %v987
    %1066 = vmatprep.subr.mxu0 %v990
    %1067 = vmatpush1.msra.mxu0 %v989
    %1068 = vmatprep.subr.mxu0 %v992
    %1069 = vmatpush1.msra.mxu0 %v991
    %1070 = vmatprep.subr.mxu0 %v994
    %1071 = vmatpush1.msra.mxu0 %v993
    %1072 = vmatprep.subr.mxu0 %v996
    %1073 = vmatpush1.msra.mxu0 %v995
    %1074 = vmatprep.subr.mxu0 %v998
    %1075 = vmatpush1.msra.mxu0 %v997
    %1076 = vmatprep.subr.mxu0 %v1000
    %1077 = vmatpush1.msra.mxu0 %v999
    %1078 = vmatprep.subr.mxu0 %v1002
    %1079 = vmatpush1.msra.mxu0 %v1001
    %1080 = vmatprep.subr.mxu0 %v1004
    %1081 = vmatpush1.msra.mxu0 %v1003
    %1082 = vmatprep.subr.mxu0 %v1006
    %1083 = vmatpush1.msra.mxu0 %v1005
    %1084 = vmatprep.subr.mxu0 %v1008
    %1085 = vmatpush1.msra.mxu0 %v1007
    %1086 = vmatprep.subr.mxu0 %v1010
    %1087 = vmatpush1.msra.mxu0 %v1009
    %1088 = vmatprep.subr.mxu0 %v1012
    %1089 = vmatpush1.msra.mxu0 %v1011
    %1090 = vmatprep.subr.mxu0 %v1014
    %1091 = vmatpush1.msra.mxu0 %v1013
    %1092 = vmatprep.subr.mxu0 %v1016
    %1093 = vmatpush1.msra.mxu0 %v1015
    %1094 = vmatprep.subr.mxu0 %v1018
    %1095 = vmatpush1.msra.mxu0 %v1017
    %1096 = vmatprep.subr.mxu0 %v1020
    %1097 = vmatpush1.msra.mxu0 %v1019
    %1098 = vmatprep.subr.mxu0 %v1022
    %1099 = vmatpush1.msra.mxu0 %v1021
    %1100 = vmatprep.subr.mxu0 %v1024
    %1101 = vmatpush1.msra.mxu0 %v1023
    %1102 = vmatprep.mubr.f32.mxu0 %v960
    %1103 = vmatmul.mubr.f32.gmra.mrb[0].mxu0 %v959
    %v1104 = vpop.f32.mrb[0].mxu0
    %v1105 = vadd.f32 %v1031, %v1104
    %v1106 = vpop.f32.mrb[0].mxu0
    %v1107 = vadd.f32 %v1035, %v1106
    %1108 = vdwg.mxu0
    %1109 = vmatprep.subr.mxu0 %v143
    %1110 = vmatpush1.msra.mxu0 %v142
    %1111 = vmatprep.subr.mxu0 %v145
    %1112 = vmatpush1.msra.mxu0 %v144
    %1113 = vmatprep.subr.mxu0 %v147
    %1114 = vmatpush1.msra.mxu0 %v146
    %1115 = vmatprep.subr.mxu0 %v149
    %1116 = vmatpush1.msra.mxu0 %v148
    %1117 = vmatprep.subr.mxu0 %v151
    %1118 = vmatpush1.msra.mxu0 %v150
    %1119 = vmatprep.subr.mxu0 %v153
    %1120 = vmatpush1.msra.mxu0 %v152
    %1121 = vmatprep.subr.mxu0 %v155
    %1122 = vmatpush1.msra.mxu0 %v154
    %1123 = vmatprep.subr.mxu0 %v157
    %1124 = vmatpush1.msra.mxu0 %v156
    %1125 = vmatprep.subr.mxu0 %v159
    %1126 = vmatpush1.msra.mxu0 %v158
    %1127 = vmatprep.subr.mxu0 %v161
    %1128 = vmatpush1.msra.mxu0 %v160
    %1129 = vmatprep.subr.mxu0 %v163
    %1130 = vmatpush1.msra.mxu0 %v162
    %1131 = vmatprep.subr.mxu0 %v165
    %1132 = vmatpush1.msra.mxu0 %v164
    %1133 = vmatprep.subr.mxu0 %v167
    %1134 = vmatpush1.msra.mxu0 %v166
    %1135 = vmatprep.subr.mxu0 %v169
    %1136 = vmatpush1.msra.mxu0 %v168
    %1137 = vmatprep.subr.mxu0 %v171
    %1138 = vmatpush1.msra.mxu0 %v170
    %1139 = vmatprep.subr.mxu0 %v173
    %1140 = vmatpush1.msra.mxu0 %v172
    %1141 = vmatprep.subr.mxu0 %v175
    %1142 = vmatpush1.msra.mxu0 %v174
    %1143 = vmatprep.subr.mxu0 %v177
    %1144 = vmatpush1.msra.mxu0 %v176
    %1145 = vmatprep.subr.mxu0 %v179
    %1146 = vmatpush1.msra.mxu0 %v178
    %1147 = vmatprep.subr.mxu0 %v181
    %1148 = vmatpush1.msra.mxu0 %v180
    %1149 = vmatprep.subr.mxu0 %v183
    %1150 = vmatpush1.msra.mxu0 %v182
    %1151 = vmatprep.subr.mxu0 %v185
    %1152 = vmatpush1.msra.mxu0 %v184
    %1153 = vmatprep.subr.mxu0 %v187
    %1154 = vmatpush1.msra.mxu0 %v186
    %1155 = vmatprep.subr.mxu0 %v189
    %1156 = vmatpush1.msra.mxu0 %v188
    %1157 = vmatprep.subr.mxu0 %v191
    %1158 = vmatpush1.msra.mxu0 %v190
    %1159 = vmatprep.subr.mxu0 %v193
    %1160 = vmatpush1.msra.mxu0 %v192
    %1161 = vmatprep.subr.mxu0 %v195
    %1162 = vmatpush1.msra.mxu0 %v194
    %1163 = vmatprep.subr.mxu0 %v197
    %1164 = vmatpush1.msra.mxu0 %v196
    %1165 = vmatprep.subr.mxu0 %v199
    %1166 = vmatpush1.msra.mxu0 %v198
    %1167 = vmatprep.subr.mxu0 %v201
    %1168 = vmatpush1.msra.mxu0 %v200
    %1169 = vmatprep.subr.mxu0 %v203
    %1170 = vmatpush1.msra.mxu0 %v202
    %1171 = vmatprep.subr.mxu0 %v205
    %1172 = vmatpush1.msra.mxu0 %v204
    %1173 = vmatprep.mubr.f32.mxu0 %v1107
    %1174 = vmatmul.mubr.f32.gmra.mrb[0].mxu0 %v1105
    %v1175 = vpop.f32.mrb[0].mxu0
    %v1176 = vadd.f32 0.0, %v1175
    %v1177 = vpop.f32.mrb[0].mxu0
    %v1178 = vadd.f32 0.0, %v1177
    %1179 = vdwg.mxu0
    %v1180 = vsub.f32 %v1105, %v1176
    %v1181 = vsub.f32 %v1107, %v1178
    %v1182 = vmul.f32 %v1180, %v1180
    %v1183 = vmul.f32 %v1181, %v1181
    %1184 = vmatprep.subr.mxu0 %v143
    %1185 = vmatpush1.msra.mxu0 %v142
    %1186 = vmatprep.subr.mxu0 %v145
    %1187 = vmatpush1.msra.mxu0 %v144
    %1188 = vmatprep.subr.mxu0 %v147
    %1189 = vmatpush1.msra.mxu0 %v146
    %1190 = vmatprep.subr.mxu0 %v149
    %1191 = vmatpush1.msra.mxu0 %v148
    %1192 = vmatprep.subr.mxu0 %v151
    %1193 = vmatpush1.msra.mxu0 %v150
    %1194 = vmatprep.subr.mxu0 %v153
    %1195 = vmatpush1.msra.mxu0 %v152
    %1196 = vmatprep.subr.mxu0 %v155
    %1197 = vmatpush1.msra.mxu0 %v154
    %1198 = vmatprep.subr.mxu0 %v157
    %1199 = vmatpush1.msra.mxu0 %v156
    %1200 = vmatprep.subr.mxu0 %v159
    %1201 = vmatpush1.msra.mxu0 %v158
    %1202 = vmatprep.subr.mxu0 %v161
    %1203 = vmatpush1.msra.mxu0 %v160
    %1204 = vmatprep.subr.mxu0 %v163
    %1205 = vmatpush1.msra.mxu0 %v162
    %1206 = vmatprep.subr.mxu0 %v165
    %1207 = vmatpush1.msra.mxu0 %v164
    %1208 = vmatprep.subr.mxu0 %v167
    %1209 = vmatpush1.msra.mxu0 %v166
    %1210 = vmatprep.subr.mxu0 %v169
    %1211 = vmatpush1.msra.mxu0 %v168
    %1212 = vmatprep.subr.mxu0 %v171
    %1213 = vmatpush1.msra.mxu0 %v170
    %1214 = vmatprep.subr.mxu0 %v173
    %1215 = vmatpush1.msra.mxu0 %v172
    %1216 = vmatprep.subr.mxu0 %v175
    %1217 = vmatpush1.msra.mxu0 %v174
    %1218 = vmatprep.subr.mxu0 %v177
    %1219 = vmatpush1.msra.mxu0 %v176
    %1220 = vmatprep.subr.mxu0 %v179
    %1221 = vmatpush1.msra.mxu0 %v178
    %1222 = vmatprep.subr.mxu0 %v181
    %1223 = vmatpush1.msra.mxu0 %v180
    %1224 = vmatprep.subr.mxu0 %v183
    %1225 = vmatpush1.msra.mxu0 %v182
    %1226 = vmatprep.subr.mxu0 %v185
    %1227 = vmatpush1.msra.mxu0 %v184
    %1228 = vmatprep.subr.mxu0 %v187
    %1229 = vmatpush1.msra.mxu0 %v186
    %1230 = vmatprep.subr.mxu0 %v189
    %1231 = vmatpush1.msra.mxu0 %v188
    %1232 = vmatprep.subr.mxu0 %v191
    %1233 = vmatpush1.msra.mxu0 %v190
    %1234 = vmatprep.subr.mxu0 %v193
    %1235 = vmatpush1.msra.mxu0 %v192
    %1236 = vmatprep.subr.mxu0 %v195
    %1237 = vmatpush1.msra.mxu0 %v194
    %1238 = vmatprep.subr.mxu0 %v197
    %1239 = vmatpush1.msra.mxu0 %v196
    %1240 = vmatprep.subr.mxu0 %v199
    %1241 = vmatpush1.msra.mxu0 %v198
    %1242 = vmatprep.subr.mxu0 %v201
    %1243 = vmatpush1.msra.mxu0 %v200
    %1244 = vmatprep.subr.mxu0 %v203
    %1245 = vmatpush1.msra.mxu0 %v202
    %1246 = vmatprep.subr.mxu0 %v205
    %1247 = vmatpush1.msra.mxu0 %v204
    %1248 = vmatprep.mubr.f32.mxu0 %v1183
    %1249 = vmatmul.mubr.f32.gmra.mrb[0].mxu0 %v1182
    %v1250 = vpop.f32.mrb[0].mxu0
    %v1251 = vadd.f32 1e-05, %v1250
    %v1252 = vpop.f32.mrb[0].mxu0
    %v1253 = vadd.f32 1e-05, %v1252
    %1254 = vdwg.mxu0
    %v1255 = vrsqrt.pop %v1251
    %v1256 = vrsqrt.pop %v1253
    %v1257 = vmul.f32 %v1180, %v1255
    %v1258 = vmul.f32 %v1181, %v1256
    %s1259 = scalar_lea.vmem %s5, 4
    %v1260 = vld [vmem:[%s1259] ss:$8 sm:$0x3]
    %v1262 = vlaneseq
    %v1263 = vshrl.u32 %v1262, 7
    %v1264 = vsub.s32 0, %v1263
    %v1265 = vrot.slane %v1260, %v1264
    %v1266 = vlaneseq
    %v1267 = vshrl.u32 %v1266, 7
    %v1268 = vsub.s32 1, %v1267
    %v1269 = vrot.slane %v1260, %v1268
    %v1272 = vmul.f32 %v1257, %v1265
    %v1273 = vmul.f32 %v1258, %v1269
    %s1274 = scalar_lea.vmem %s5, 5
    %v1275 = vld [vmem:[%s1274] ss:$8 sm:$0x3]
    %v1277 = vlaneseq
    %v1278 = vshrl.u32 %v1277, 7
    %v1279 = vsub.s32 0, %v1278
    %v1280 = vrot.slane %v1275, %v1279
    %v1281 = vlaneseq
    %v1282 = vshrl.u32 %v1281, 7
    %v1283 = vsub.s32 1, %v1282
    %v1284 = vrot.slane %v1275, %v1283
    %v1287 = vadd.f32 %v1272, %v1280
    %v1288 = vadd.f32 %v1273, %v1284
    %vm1289 = vcmp.ge.f32.partialorder %v1287, 0.0
    %vm1290 = vcmp.ge.f32.partialorder %v1288, 0.0
    %v1291 = vmul.f32 %v1287, 0.01
    %v1292 = vmul.f32 %v1288, 0.01
    %v1293 = vsel %vm1289, %v1287, %v1291
    %v1294 = vsel %vm1290, %v1288, %v1292
    %1295 = vst [vmem:[%s6] sm:$0xff] %v1293
    %1296 = vst [vmem:[%s6 + $0x8] sm:$0xff] %v1294
    // Predicated region
    $region42: #{_forward.1} parent=1 // pred_check
      _
    $region43: #{_forward.1} parent=1 // pred_check_branch
      %1298 = sbr.rel (0) target = $region45
    $region44: #{_forward.1} parent=1 // pred_region
      _
    $region45: #{_forward.1} parent=1 // pred_fallthru
      _
    // Predicated region
    $region46: #{_forward.1} parent=1 // pred_check
      _
    $region47: #{_forward.1} parent=1 // pred_check_branch
      %1300 = sbr.rel (0) target = $region49
    $region48: #{_forward.1} parent=1 // pred_region
      _
    $region49: #{_forward.1} parent=1 // pred_fallthru
      _
    %1301 = vsyncpa [#allocation3], 1
    %1302 = vsyncpa [#allocation5], 1
    %1303 = vsyncpa [#allocation8], 1

</llo_original>
